<compile_context>
chip_gen: v7x
topology: tpu7x:2x2x1
jax: 0.10.0
libtpu: 0.0.40
codegen_flags: <defaults>
</compile_context>

<pallas_src>
import functools

import jax
import jax.numpy as jnp
from jax.experimental import pallas as pl
from jax.experimental.pallas import tpu as pltpu


def _qmc_kernel(pos_ref, a_ref, b2_ref, sum_ref, sq_ref, acc_s, acc_q,
                *, beta, n_valid, tile, tiles_per_core):
    """Per-tile local energy (walkers lane-dense) + running lane-wise sums."""
    p = pl.program_id(0)            # core slice (core_parallel on v7x)
    i = pl.program_id(1)            # walker tile within the core slice

    @pl.when(i == 0)
    def _():
        acc_s[...] = jnp.zeros_like(acc_s)
        acc_q[...] = jnp.zeros_like(acc_q)

    pos = pos_ref[...].astype(jnp.float32)        # (D+1, TN), last row == 1
    a = a_ref[...]                                # (C, D+1) f32, bias folded in
    b2 = b2_ref[...]                              # (1, C)   f32
    c = a.shape[0]

    # pos2f = |x|^2 + 1  (the ones row adds the +1; constants pre-folded).
    pos2f = jnp.sum(pos * pos, axis=0, keepdims=True)             # (1, TN)

    # expo[c,n] = -beta*|x_n - c_c|^2 + log w_c  (bias carried by the MXU dot)
    cross = jnp.dot(a, pos, preferred_element_type=jnp.float32)   # (C, TN)
    expo = cross - beta * pos2f                                   # (C, TN)
    wphi = jnp.exp(expo)                                          # (C, TN) EUP

    # Axis-0 (center) reductions on the otherwise-idle MXU.
    ones_row = jnp.ones((1, c), jnp.float32)
    psi = jnp.dot(ones_row, wphi, preferred_element_type=jnp.float32)        # (1,TN)
    s1 = jnp.dot(b2, wphi, preferred_element_type=jnp.float32)               # (1,TN)
    s2 = jnp.dot(ones_row, expo * wphi, preferred_element_type=jnp.float32)  # (1,TN)
    lap = s1 - (4.0 * beta) * s2                                             # (1,TN)

    # EUP-friendly reciprocal + one Newton step (full f32 accuracy, no divide).
    rpsi = pl.reciprocal(psi, approx=True)
    rpsi = rpsi * (2.0 - psi * rpsi)

    # E_loc = 0.5|x|^2 - 0.5 lap/psi ;  0.5|x|^2 = 0.5*pos2f - 0.5
    eloc = 0.5 * pos2f - 0.5 - 0.5 * lap * rpsi                   # (1, TN)

    block_start = (p * tiles_per_core + i) * tile

    # Interior tiles: no masking work at all.
    @pl.when(block_start + tile <= n_valid)
    def _():
        acc_s[...] += eloc
        acc_q[...] += eloc * eloc

    # Tail tile(s): select-mask padded / OOB lanes out of the sums.
    # (Must remain a select, NOT a multiply-by-mask: OOB lanes may hold Inf/NaN.)
    @pl.when(block_start + tile > n_valid)
    def _():
        lane = jax.lax.broadcasted_iota(jnp.int32, (1, tile), 1)
        e = jnp.where(block_start + lane < n_valid, eloc, 0.0)
        acc_s[...] += e
        acc_q[...] += e * e

    # Cross-lane reduce + scalar store only once per core slice.
    @pl.when(i == pl.num_programs(1) - 1)
    def _():
        sum_ref[...] = jnp.sum(acc_s[...]).reshape(1, 1, 1)
        sq_ref[...] = jnp.sum(acc_q[...]).reshape(1, 1, 1)


def _num_core_slices():
    """2 core slices on v7x (2 TensorCores/chip); 1 on v5e/v6e."""
    try:
        kind = jax.devices()[0].device_kind.lower()
    except Exception:
        return 1
    return 2 if ("v7" in kind or "7x" in kind) else 1


def _plan_tiles(n, core_slices, tile_n):
    """Pick (core_slices, tile, tiles_per_core); tile is a multiple of 128."""
    core_slices = max(1, int(core_slices))
    while True:
        per_core = pl.cdiv(n, core_slices)
        tile = min(tile_n, max(128, ((per_core + 127) // 128) * 128))
        tiles_per_core = pl.cdiv(per_core, tile)
        # Every core slice must start inside the data; otherwise shrink.
        if core_slices == 1 or (core_slices - 1) * tiles_per_core * tile < n:
            return core_slices, tile, tiles_per_core
        core_slices -= 1


def _local_energy_sums(pos, centers, weights, beta, *, tile_n=8192,
                       core_slices=None):
    """Pallas reduction over walkers -> (sum E_loc, sum E_loc^2)."""
    n, d = pos.shape
    c = centers.shape[0]
    beta = float(beta)
    d_aug = d + 1

    if core_slices is None:
        core_slices = _num_core_slices()
    core_slices, tile, tiles_per_core = _plan_tiles(n, core_slices, tile_n)

    # Lane-dense layout with the bias row folded in: pos_aug = [x^T ; 1] of
    # shape (D+1, N).  Single fused transpose+concat => one extra HBM pass
    # over pos (a caller storing walkers as (D, N) could avoid it entirely).
    # No jnp.pad: the partial last block reads OOB lanes that the in-kernel
    # select mask drops from the sums.
    pos_aug = jnp.concatenate(
        [jnp.transpose(pos), jnp.ones((1, n), dtype=pos.dtype)], axis=0)

    # Fold constants (tiny (C,D+1)/(1,C) arrays, built once in the wrapper).
    # Requires positive mixture weights (true for this synthetic wf).
    centers_f = centers.astype(jnp.float32)
    logw = jnp.log(weights.astype(jnp.float32)).reshape(c, 1)
    cen2 = jnp.sum(centers_f * centers_f, axis=1, keepdims=True)
    # bias column: -beta|c|^2 + log w + beta   (the +beta cancels the +1 that
    # the ones row contributes to pos2f = |x|^2 + 1)
    bias = (-beta) * cen2 + logw + beta
    a_aug = jnp.concatenate([(2.0 * beta) * centers_f, bias], axis=1)   # (C, D+1)
    b2 = ((4.0 * beta) * logw - (2.0 * beta) * float(d)).reshape(1, c)  # (1, C)

    kernel = functools.partial(_qmc_kernel, beta=beta, n_valid=n,
                               tile=tile, tiles_per_core=tiles_per_core)

    # Clamp block indices only if the grid over-covers by >= one full tile
    # (possible on the multi-core-slice path); duplicated blocks are fully
    # masked, so they contribute nothing.
    n_blocks = pl.cdiv(n, tile)
    if core_slices * tiles_per_core > n_blocks:
        pos_map = lambda p, i: (0, jnp.minimum(p * tiles_per_core + i,
                                               n_blocks - 1))
    else:
        pos_map = lambda p, i: (0, p * tiles_per_core + i)

    itemsize = jnp.dtype(pos.dtype).itemsize
    cost = pl.CostEstimate(
        flops=int(2 * c * d_aug * n + 6 * c * n + 8 * c * n),
        transcendentals=int(c * n),
        bytes_accessed=int(d_aug * n * itemsize + c * (d_aug + 1) * 4
                           + 8 * core_slices),
    )

    def _call(dim_sem):
        return pl.pallas_call(
            kernel,
            out_shape=(jax.ShapeDtypeStruct((core_slices, 1, 1), jnp.float32),
                       jax.ShapeDtypeStruct((core_slices, 1, 1), jnp.float32)),
            grid_spec=pltpu.PrefetchScalarGridSpec(
                num_scalar_prefetch=0,
                grid=(core_slices, tiles_per_core),
                in_specs=[
                    # pos_aug (D+1, N): walker tiles on the lane axis
                    pl.BlockSpec((d_aug, tile), pos_map),
                    pl.BlockSpec((c, d_aug), lambda p, i: (0, 0)),  # 2b*c | bias
                    pl.BlockSpec((1, c), lambda p, i: (0, 0)),      # b2 row
                ],
                out_specs=[
                    pl.BlockSpec((1, 1, 1), lambda p, i: (p, 0, 0)),
                    pl.BlockSpec((1, 1, 1), lambda p, i: (p, 0, 0)),
                ],
                scratch_shapes=[pltpu.VMEM((1, tile), jnp.float32),   # sum E
                                pltpu.VMEM((1, tile), jnp.float32)],  # sum E^2
            ),
            compiler_params=pltpu.CompilerParams(dimension_semantics=dim_sem),
            cost_estimate=cost,
        )(pos_aug, a_aug, b2)

    if core_slices > 1:
        # v7x: explicit cross-TensorCore split of the walker axis.
        try:
            out_sum, out_sq = _call((pltpu.CORE_PARALLEL, pltpu.ARBITRARY))
        except Exception:  # pragma: no cover - fall back on builds w/o support
            out_sum, out_sq = _call(("parallel", "arbitrary"))
    else:
        out_sum, out_sq = _call(("arbitrary", "arbitrary"))

    # Combine per-core partials (trivial scalar work) in plain JAX.
    return jnp.sum(out_sum), jnp.sum(out_sq)


def qmc_loss_forward(out, pos, centers, weights, beta, method="energy"):
    """Mirrors QMCLoss.forward(out, pos); `out` is unused (as in the module)."""
    del out
    n = pos.shape[0]
    sum_e, sum_e2 = _local_energy_sums(pos, centers, weights, beta)
    mean_e = sum_e / n
    if method == "energy":
        return mean_e
    elif method == "variance":
        # torch.var default: unbiased (ddof=1)
        return (sum_e2 - n * mean_e * mean_e) / (n - 1)
    else:
        raise ValueError(f"unknown method {method!r}")


def _reference_local_energy(pos, centers, weights, beta):
    pos = pos.astype(jnp.float32)
    d = pos.shape[1]
    diff = pos[:, None, :] - centers[None, :, :]              # (N, C, D)
    r2 = jnp.sum(diff * diff, axis=-1)                        # (N, C)
    phi = jnp.exp(-beta * r2)
    wphi = phi * weights[None, :]
    psi = jnp.sum(wphi, axis=-1)
    lap = jnp.sum(wphi * (4.0 * beta * beta * r2 - 2.0 * beta * d), axis=-1)
    return -0.5 * lap / psi + 0.5 * jnp.sum(pos * pos, axis=-1)


if __name__ == "__main__":
    key = jax.random.PRNGKey(0)
    k_pos, k_cen, k_w = jax.random.split(key, 3)

    N, D, C = 1000, 3, 32          # walkers, spatial dims, RBF centers
    BETA = 0.5

    pos = jax.random.normal(k_pos, (N, D), dtype=jnp.float32)
    centers = 0.5 * jax.random.normal(k_cen, (C, D), dtype=jnp.float32)
    # positive mixture weights keep psi > 0 (well-defined local energy)
    weights = 0.5 + jax.random.uniform(k_w, (C,), dtype=jnp.float32)

    out_dummy = jnp.zeros((N, 1), dtype=jnp.float32)  # unused, mirrors forward(out, pos)

    energy = qmc_loss_forward(out_dummy, pos, centers, weights, BETA,
                              method="energy")
    variance = qmc_loss_forward(out_dummy, pos, centers, weights, BETA,
                                method="variance")
    jax.block_until_ready((energy, variance))

    # sanity check against a pure-JAX reference
    eloc_ref = _reference_local_energy(pos, centers, weights, BETA)
    energy_ref = jnp.mean(eloc_ref)
    var_ref = jnp.var(eloc_ref, ddof=1)
    assert jnp.allclose(energy, energy_ref, rtol=1e-3, atol=1e-3), (energy, energy_ref)
    assert jnp.allclose(variance, var_ref, rtol=1e-3, atol=1e-3), (variance, var_ref)

    print("KERNEL_OK")
</pallas_src>

<mosaic_0001>
module attributes {stable_mosaic.version = 11 : i64} {
  func.func @_qmc_kernel(%arg0: i32, %arg1: i32, %arg2: memref<4x1024xf32, #tpu.memory_space<vmem>>, %arg3: memref<32x4xf32, #tpu.memory_space<vmem>>, %arg4: memref<1x32xf32, #tpu.memory_space<vmem>>, %arg5: memref<1x1x1xf32, #tpu.memory_space<vmem>>, %arg6: memref<1x1x1xf32, #tpu.memory_space<vmem>>, %arg7: memref<1x1024xf32, #tpu.memory_space<vmem>>, %arg8: memref<1x1024xf32, #tpu.memory_space<vmem>>) attributes {dimension_semantics = [#tpu.dimension_semantics<arbitrary>, #tpu.dimension_semantics<arbitrary>], iteration_bounds = array<i64: 1, 1>, scalar_prefetch = 0 : i64, scratch_operands = 2 : i64, tpu.core_type = #tpu.core_type<tc>, window_params = [{transform_indices = @transform_0, window_bounds = array<i64: 4, 1024>}, {pipeline_mode = #tpu.pipeline_mode<synchronous>, transform_indices = @transform_1, window_bounds = array<i64: 32, 4>}, {pipeline_mode = #tpu.pipeline_mode<synchronous>, transform_indices = @transform_2, window_bounds = array<i64: 1, 32>}, {transform_indices = @transform_3, window_bounds = array<i64: 1, 1, 1>}, {transform_indices = @transform_4, window_bounds = array<i64: 1, 1, 1>}]} {
    %c0_i32 = arith.constant 0 : i32
    %0 = arith.cmpi eq, %arg1, %c0_i32 : i32
    %1 = arith.extui %0 : i1 to i32
    %c0_i32_0 = arith.constant 0 : i32
    %2 = arith.cmpi ne, %1, %c0_i32_0 : i32
    scf.if %2 {
      %cst_24 = arith.constant 0.000000e+00 : f32
      %50 = vector.broadcast %cst_24 : f32 to vector<1x1024xf32>
      %c0_25 = arith.constant 0 : index
      %c0_26 = arith.constant 0 : index
      %51 = vector.load %arg7[%c0_25, %c0_26] : memref<1x1024xf32, #tpu.memory_space<vmem>>, vector<1x1024xf32>
      tpu.vector_store %arg7[%c0_25, %c0_26], %50 {strides = array<i32>} : memref<1x1024xf32, #tpu.memory_space<vmem>>, vector<1x1024xf32>,
      %cst_27 = arith.constant 0.000000e+00 : f32
      %52 = vector.broadcast %cst_27 : f32 to vector<1x1024xf32>
      %c0_28 = arith.constant 0 : index
      %c0_29 = arith.constant 0 : index
      %53 = vector.load %arg8[%c0_28, %c0_29] : memref<1x1024xf32, #tpu.memory_space<vmem>>, vector<1x1024xf32>
      tpu.vector_store %arg8[%c0_28, %c0_29], %52 {strides = array<i32>} : memref<1x1024xf32, #tpu.memory_space<vmem>>, vector<1x1024xf32>,
    } else {
    }
    %c0 = arith.constant 0 : index
    %c0_1 = arith.constant 0 : index
    %3 = vector.load %arg2[%c0, %c0_1] : memref<4x1024xf32, #tpu.memory_space<vmem>>, vector<4x1024xf32>
    %c0_2 = arith.constant 0 : index
    %c0_3 = arith.constant 0 : index
    %4 = vector.load %arg3[%c0_2, %c0_3] : memref<32x4xf32, #tpu.memory_space<vmem>>, vector<32x4xf32>
    %c0_4 = arith.constant 0 : index
    %c0_5 = arith.constant 0 : index
    %5 = vector.load %arg4[%c0_4, %c0_5] : memref<1x32xf32, #tpu.memory_space<vmem>>, vector<1x32xf32>
    %6 = arith.mulf %3, %3 : vector<4x1024xf32>
    %cst = arith.constant dense<0.000000e+00> : vector<1024xf32>
    %7 = vector.multi_reduction <add>, %6, %cst [0] : vector<4x1024xf32> to vector<1024xf32>
    %8 = vector.shape_cast %7 : vector<1024xf32> to vector<1x1024xf32>
    %cst_6 = arith.constant dense<0.000000e+00> : vector<32x1024xf32>
    %9 = tpu.matmul %4, %3, %cst_6 {dimension_numbers = #tpu.dot_dimension_numbers<[1], [0], [0], [1], [0, 0, 1, 1], [], []>} : vector<32x4xf32>, vector<4x1024xf32>, vector<32x1024xf32> -> vector<32x1024xf32>
    %cst_7 = arith.constant 5.000000e-01 : f32
    %10 = vector.broadcast %cst_7 : f32 to vector<1x1024xf32>
    %11 = arith.mulf %10, %8 : vector<1x1024xf32>
    %12 = vector.broadcast %11 : vector<1x1024xf32> to vector<32x1024xf32>
    %13 = arith.subf %9, %12 : vector<32x1024xf32>
    %14 = math.exp %13 : vector<32x1024xf32>
    %cst_8 = arith.constant 1.000000e+00 : f32
    %15 = vector.broadcast %cst_8 : f32 to vector<1x32xf32>
    %cst_9 = arith.constant dense<0.000000e+00> : vector<1x1024xf32>
    %16 = tpu.matmul %15, %14, %cst_9 {dimension_numbers = #tpu.dot_dimension_numbers<[1], [0], [0], [1], [0, 0, 1, 1], [], []>} : vector<1x32xf32>, vector<32x1024xf32>, vector<1x1024xf32> -> vector<1x1024xf32>
    %cst_10 = arith.constant dense<0.000000e+00> : vector<1x1024xf32>
    %17 = tpu.matmul %5, %14, %cst_10 {dimension_numbers = #tpu.dot_dimension_numbers<[1], [0], [0], [1], [0, 0, 1, 1], [], []>} : vector<1x32xf32>, vector<32x1024xf32>, vector<1x1024xf32> -> vector<1x1024xf32>
    %18 = arith.mulf %13, %14 : vector<32x1024xf32>
    %cst_11 = arith.constant dense<0.000000e+00> : vector<1x1024xf32>
    %19 = tpu.matmul %15, %18, %cst_11 {dimension_numbers = #tpu.dot_dimension_numbers<[1], [0], [0], [1], [0, 0, 1, 1], [], []>} : vector<1x32xf32>, vector<32x1024xf32>, vector<1x1024xf32> -> vector<1x1024xf32>
    %cst_12 = arith.constant 2.000000e+00 : f32
    %20 = vector.broadcast %cst_12 : f32 to vector<1x1024xf32>
    %21 = arith.mulf %20, %19 : vector<1x1024xf32>
    %22 = arith.subf %17, %21 : vector<1x1024xf32>
    %23 = tpu.reciprocal %16 {approx = true} : vector<1x1024xf32> -> vector<1x1024xf32>
    %24 = arith.mulf %16, %23 : vector<1x1024xf32>
    %cst_13 = arith.constant 2.000000e+00 : f32
    %25 = vector.broadcast %cst_13 : f32 to vector<1x1024xf32>
    %26 = arith.subf %25, %24 : vector<1x1024xf32>
    %27 = arith.mulf %23, %26 : vector<1x1024xf32>
    %cst_14 = arith.constant 5.000000e-01 : f32
    %28 = vector.broadcast %cst_14 : f32 to vector<1x1024xf32>
    %29 = arith.mulf %28, %8 : vector<1x1024xf32>
    %cst_15 = arith.constant 5.000000e-01 : f32
    %30 = vector.broadcast %cst_15 : f32 to vector<1x1024xf32>
    %31 = arith.subf %29, %30 : vector<1x1024xf32>
    %cst_16 = arith.constant 5.000000e-01 : f32
    %32 = vector.broadcast %cst_16 : f32 to vector<1x1024xf32>
    %33 = arith.mulf %32, %22 : vector<1x1024xf32>
    %34 = arith.mulf %33, %27 : vector<1x1024xf32>
    %35 = arith.subf %31, %34 : vector<1x1024xf32>
    %c1_i32 = arith.constant 1 : i32
    %36 = arith.muli %arg0, %c1_i32 : i32
    %37 = arith.addi %36, %arg1 : i32
    %c1024_i32 = arith.constant 1024 : i32
    %38 = arith.muli %37, %c1024_i32 : i32
    %c1024_i32_17 = arith.constant 1024 : i32
    %39 = arith.addi %38, %c1024_i32_17 : i32
    %c1000_i32 = arith.constant 1000 : i32
    %40 = arith.cmpi sle, %39, %c1000_i32 : i32
    %41 = arith.extui %40 : i1 to i32
    %c0_i32_18 = arith.constant 0 : i32
    %42 = arith.cmpi ne, %41, %c0_i32_18 : i32
    scf.if %42 {
      %c0_24 = arith.constant 0 : index
      %c0_25 = arith.constant 0 : index
      %50 = vector.load %arg7[%c0_24, %c0_25] : memref<1x1024xf32, #tpu.memory_space<vmem>>, vector<1x1024xf32>
      %51 = arith.addf %50, %35 : vector<1x1024xf32>
      %c0_26 = arith.constant 0 : index
      %c0_27 = arith.constant 0 : index
      %52 = vector.load %arg7[%c0_26, %c0_27] : memref<1x1024xf32, #tpu.memory_space<vmem>>, vector<1x1024xf32>
      tpu.vector_store %arg7[%c0_26, %c0_27], %51 {strides = array<i32>} : memref<1x1024xf32, #tpu.memory_space<vmem>>, vector<1x1024xf32>,
      %c0_28 = arith.constant 0 : index
      %c0_29 = arith.constant 0 : index
      %53 = vector.load %arg8[%c0_28, %c0_29] : memref<1x1024xf32, #tpu.memory_space<vmem>>, vector<1x1024xf32>
      %54 = arith.mulf %35, %35 : vector<1x1024xf32>
      %55 = arith.addf %53, %54 : vector<1x1024xf32>
      %c0_30 = arith.constant 0 : index
      %c0_31 = arith.constant 0 : index
      %56 = vector.load %arg8[%c0_30, %c0_31] : memref<1x1024xf32, #tpu.memory_space<vmem>>, vector<1x1024xf32>
      tpu.vector_store %arg8[%c0_30, %c0_31], %55 {strides = array<i32>} : memref<1x1024xf32, #tpu.memory_space<vmem>>, vector<1x1024xf32>,
    } else {
    }
    %c1024_i32_19 = arith.constant 1024 : i32
    %43 = arith.addi %38, %c1024_i32_19 : i32
    %c1000_i32_20 = arith.constant 1000 : i32
    %44 = arith.cmpi sgt, %43, %c1000_i32_20 : i32
    %45 = arith.extui %44 : i1 to i32
    %c0_i32_21 = arith.constant 0 : i32
    %46 = arith.cmpi ne, %45, %c0_i32_21 : i32
    scf.if %46 {
      %50 = tpu.iota {dimensions = array<i32: 1>} : vector<1x1024xi32>
      %51 = vector.broadcast %38 : i32 to vector<1x1024xi32>
      %52 = arith.addi %51, %50 : vector<1x1024xi32>
      %c1000_i32_24 = arith.constant 1000 : i32
      %53 = vector.broadcast %c1000_i32_24 : i32 to vector<1x1024xi32>
      %54 = arith.cmpi slt, %52, %53 : vector<1x1024xi32>
      %cst_25 = arith.constant 0.000000e+00 : f32
      %55 = vector.broadcast %cst_25 : f32 to vector<1x1024xf32>
      %56 = arith.select %54, %35, %55 : vector<1x1024xi1>, vector<1x1024xf32>
      %c0_26 = arith.constant 0 : index
      %c0_27 = arith.constant 0 : index
      %57 = vector.load %arg7[%c0_26, %c0_27] : memref<1x1024xf32, #tpu.memory_space<vmem>>, vector<1x1024xf32>
      %58 = arith.addf %57, %56 : vector<1x1024xf32>
      %c0_28 = arith.constant 0 : index
      %c0_29 = arith.constant 0 : index
      %59 = vector.load %arg7[%c0_28, %c0_29] : memref<1x1024xf32, #tpu.memory_space<vmem>>, vector<1x1024xf32>
      tpu.vector_store %arg7[%c0_28, %c0_29], %58 {strides = array<i32>} : memref<1x1024xf32, #tpu.memory_space<vmem>>, vector<1x1024xf32>,
      %c0_30 = arith.constant 0 : index
      %c0_31 = arith.constant 0 : index
      %60 = vector.load %arg8[%c0_30, %c0_31] : memref<1x1024xf32, #tpu.memory_space<vmem>>, vector<1x1024xf32>
      %61 = arith.mulf %56, %56 : vector<1x1024xf32>
      %62 = arith.addf %60, %61 : vector<1x1024xf32>
      %c0_32 = arith.constant 0 : index
      %c0_33 = arith.constant 0 : index
      %63 = vector.load %arg8[%c0_32, %c0_33] : memref<1x1024xf32, #tpu.memory_space<vmem>>, vector<1x1024xf32>
      tpu.vector_store %arg8[%c0_32, %c0_33], %62 {strides = array<i32>} : memref<1x1024xf32, #tpu.memory_space<vmem>>, vector<1x1024xf32>,
    } else {
    }
    %c0_i32_22 = arith.constant 0 : i32
    %47 = arith.cmpi eq, %arg1, %c0_i32_22 : i32
    %48 = arith.extui %47 : i1 to i32
    %c0_i32_23 = arith.constant 0 : i32
    %49 = arith.cmpi ne, %48, %c0_i32_23 : i32
    scf.if %49 {
      %c0_24 = arith.constant 0 : index
      %c0_25 = arith.constant 0 : index
      %50 = vector.load %arg7[%c0_24, %c0_25] : memref<1x1024xf32, #tpu.memory_space<vmem>>, vector<1x1024xf32>
      %51 = vector.shape_cast %50 : vector<1x1024xf32> to vector<1x1x1024xf32>
      %cst_26 = arith.constant dense<0.000000e+00> : vector<1xf32>
      %52 = vector.multi_reduction <add>, %51, %cst_26 [1, 2] : vector<1x1x1024xf32> to vector<1xf32>
      %53 = vector.shape_cast %52 : vector<1xf32> to vector<1x1x1xf32>
      %54 = vector.extract %53[0, 0, 0] : f32 from vector<1x1x1xf32>
      %55 = vector.broadcast %54 : f32 to vector<1x1x1xf32>
      %c0_27 = arith.constant 0 : index
      %c0_28 = arith.constant 0 : index
      %c0_29 = arith.constant 0 : index
      %56 = vector.load %arg5[%c0_27, %c0_28, %c0_29] : memref<1x1x1xf32, #tpu.memory_space<vmem>>, vector<1x1x1xf32>
      tpu.vector_store %arg5[%c0_27, %c0_28, %c0_29], %55 {strides = array<i32>} : memref<1x1x1xf32, #tpu.memory_space<vmem>>, vector<1x1x1xf32>,
      %c0_30 = arith.constant 0 : index
      %c0_31 = arith.constant 0 : index
      %57 = vector.load %arg8[%c0_30, %c0_31] : memref<1x1024xf32, #tpu.memory_space<vmem>>, vector<1x1024xf32>
      %58 = vector.shape_cast %57 : vector<1x1024xf32> to vector<1x1x1024xf32>
      %cst_32 = arith.constant dense<0.000000e+00> : vector<1xf32>
      %59 = vector.multi_reduction <add>, %58, %cst_32 [1, 2] : vector<1x1x1024xf32> to vector<1xf32>
      %60 = vector.shape_cast %59 : vector<1xf32> to vector<1x1x1xf32>
      %61 = vector.extract %60[0, 0, 0] : f32 from vector<1x1x1xf32>
      %62 = vector.broadcast %61 : f32 to vector<1x1x1xf32>
      %c0_33 = arith.constant 0 : index
      %c0_34 = arith.constant 0 : index
      %c0_35 = arith.constant 0 : index
      %63 = vector.load %arg6[%c0_33, %c0_34, %c0_35] : memref<1x1x1xf32, #tpu.memory_space<vmem>>, vector<1x1x1xf32>
      tpu.vector_store %arg6[%c0_33, %c0_34, %c0_35], %62 {strides = array<i32>} : memref<1x1x1xf32, #tpu.memory_space<vmem>>, vector<1x1x1xf32>,
    } else {
    }
    return
  }
  func.func @transform_0(%arg0: i32, %arg1: i32) -> (i32, i32) {
    %c1_i32 = arith.constant 1 : i32
    %0 = arith.muli %arg0, %c1_i32 : i32
    %1 = arith.addi %0, %arg1 : i32
    %c0_i32 = arith.constant 0 : i32
    %c0_i32_0 = arith.constant 0 : i32
    return %c0_i32, %1 : i32, i32
  }
  func.func @transform_1(%arg0: i32, %arg1: i32) -> (i32, i32) {
    %c0_i32 = arith.constant 0 : i32
    %c0_i32_0 = arith.constant 0 : i32
    %c0_i32_1 = arith.constant 0 : i32
    return %c0_i32, %c0_i32_0 : i32, i32
  }
  func.func @transform_2(%arg0: i32, %arg1: i32) -> (i32, i32) {
    %c0_i32 = arith.constant 0 : i32
    %c0_i32_0 = arith.constant 0 : i32
    %c0_i32_1 = arith.constant 0 : i32
    return %c0_i32, %c0_i32_0 : i32, i32
  }
  func.func @transform_3(%arg0: i32, %arg1: i32) -> (i32, i32, i32) {
    %c0_i32 = arith.constant 0 : i32
    %c0_i32_0 = arith.constant 0 : i32
    %c0_i32_1 = arith.constant 0 : i32
    return %arg0, %c0_i32, %c0_i32_0 : i32, i32, i32
  }
  func.func @transform_4(%arg0: i32, %arg1: i32) -> (i32, i32, i32) {
    %c0_i32 = arith.constant 0 : i32
    %c0_i32_0 = arith.constant 0 : i32
    %c0_i32_1 = arith.constant 0 : i32
    return %arg0, %c0_i32, %c0_i32_0 : i32, i32, i32
  }
}

</mosaic_0001>

<llo_original>
// kernel: tpu_custom_call.1
$region0: #{tpu_custom_call.1}
  #allocation0 [shape = 'u32[]', space=smem, size = 0x4, offset = 0x4, fixed_abs, tag = 'smem constant byte address 0x4 - core index']
  #allocation1 [shape = 'u32[144,128]{1,0:T(1,128)}', space=vmem, size = 0x12000, scoped, tag = 'internal scratch']
  #allocation2 [shape = 'f32[1,1024]{1,0:T(1,128)}', space=vmem, size = 0x1000, scoped, tag = 'scratch operand']
  #allocation3 [shape = 'f32[1,1024]{1,0:T(1,128)}', space=vmem, size = 0x1000, scoped, tag = 'scratch operand']
  %s0 = inlined_call_operand.vmem [shape: f32[4,1000], index: 0, kind: input, shape index: {}]
  %s1 = inlined_call_operand.vmem [shape: f32[32,4], index: 1, kind: input, shape index: {}]
  %s2 = inlined_call_operand.vmem [shape: f32[1,32], index: 2, kind: input, shape index: {}]
  %s3 = inlined_call_operand.hbm [shape: f32[1,1,1], index: 3, kind: output, shape index: {0}]
  %s4 = inlined_call_operand.hbm [shape: f32[1,1,1], index: 4, kind: output, shape index: {1}]
  %5 = xla_tuple %s3, %s4
  %s6 = sld [smem:[#allocation0]]
  $region46: #{tpu_custom_call.1} parent=0
    _
  %s8 = ssub.s32 1, %s6
  %s9 = scalar_select 0, %s8, %s6
  $region1: #{tpu_custom_call.1} parent=0
    #allocation4 [shape = 'u8[512]{0}', space=vmem, size = 0x400, scoped, tag = 'output window, operand 0, single buffered']
    #allocation5 [shape = 's32[1]{0}', space=sflag, size = 0x4, scoped, tag = 'scoped memory for tpu_custom_call.1']
    #allocation6 [shape = 'u8[512]{0}', space=vmem, size = 0x400, scoped, tag = 'output window, operand 1, single buffered']
    #allocation7 [shape = 's32[1]{0}', space=sflag, size = 0x4, scoped, tag = 'scoped memory for tpu_custom_call.1']
    %10 = vsyncpa [#allocation5], 0
    %11 = vsyncpa [#allocation7], 0
    // Predicated region
    $region2: #{tpu_custom_call.1} parent=1 // pred_check
      _
    $region3: #{tpu_custom_call.1} parent=1 // pred_check_branch
      %13 = sbr.rel (0) target = $region5
    $region4: #{tpu_custom_call.1} parent=1 // pred_region
      %s14 = sadd.s32 0, 0
      %s15 = smul.u32 8, %s14
      %p16 = scmp.lt.s32.totalorder %s15, 7
      %s17 = scalar_select %p16, %s15, 7
      %s18 = smul.addr %s17, 4
      %s19 = scalar_lea.vmem %s0, %s18
      %s20 = sadd.s32 0, 0
      %s21 = smul.u32 8, %s20
    $region5: #{tpu_custom_call.1} parent=1 // pred_fallthru
      _
    // Predicated region
    $region6: #{tpu_custom_call.1} parent=1 // pred_check
      _
    $region7: #{tpu_custom_call.1} parent=1 // pred_check_branch
      %23 = sbr.rel (0) target = $region9
    $region8: #{tpu_custom_call.1} parent=1 // pred_region
      _
    $region9: #{tpu_custom_call.1} parent=1 // pred_fallthru
      _
    // Predicated region
    $region10: #{tpu_custom_call.1} parent=1 // pred_check
      _
    $region11: #{tpu_custom_call.1} parent=1 // pred_check_branch
      %25 = sbr.rel (0) target = $region13
    $region12: #{tpu_custom_call.1} parent=1 // pred_region
      _
    $region13: #{tpu_custom_call.1} parent=1 // pred_fallthru
      _
    %s26 = sadd.s32 0, 0
    %s27 = smul.u32 8, %s26
    %p28 = scmp.lt.s32.totalorder %s27, 7
    %s29 = scalar_select %p28, %s27, 7
    %s30 = smul.addr %s29, 4
    %s31 = scalar_lea.vmem %s0, %s30
    %s32 = sadd.s32 0, 0
    %s33 = smul.u32 8, %s32
    %p34 = scmp.lt.s32.totalorder %s33, 7
    %s35 = scalar_select %p34, %s33, 7
    %s36 = smul.addr %s35, 4
    %s37 = scalar_lea.vmem %s0, %s36
    %s38 = sadd.s32 0, 0
    %s39 = smul.u32 8, %s38
    %p40 = scmp.eq.s32.totalorder 0, 0
    // Predicated region
    $region14: #{tpu_custom_call.1} parent=1 // pred_check
      %p41 = pneg %p40
    $region15: #{tpu_custom_call.1} parent=1 // pred_check_branch
      %43 = sbr.rel (%p41) target = $region17
    $region16: #{tpu_custom_call.1} parent=1 // pred_region
      %44 = vst [vmem:[#allocation2] sm:$0xff] 0.0
      %45 = vst [vmem:[#allocation3] sm:$0xff] 0.0
    $region17: #{tpu_custom_call.1} parent=1 // pred_fallthru
      _
    %v46 = vld [vmem:[%s37] sm:$0xff]
    %v47 = vld [vmem:[%s37 + $0x8] sm:$0xff]
    %v48 = vld [vmem:[%s37 + $0x10] sm:$0xff]
    %v49 = vld [vmem:[%s37 + $0x18] sm:$0xff]
    %v50 = vld [vmem:[%s1] sm:$0xff]
    %v51 = vld [vmem:[%s1 + $0x8] sm:$0xff]
    %v52 = vld [vmem:[%s1 + $0x10] sm:$0xff]
    %v53 = vld [vmem:[%s1 + $0x18] sm:$0xff]
    %v54 = vld [vmem:[%s2] sm:$0x1]
    %v55 = vmul.f32 %v46, %v46
    %v56 = vmul.f32 %v47, %v47
    %v57 = vmul.f32 %v48, %v48
    %v58 = vmul.f32 %v49, %v49
    %v63 = vcombine.high %v55, %v55
    %v64 = vcombine.high %v56, %v56
    %v65 = vcombine.high %v57, %v57
    %v66 = vcombine.high %v58, %v58
    %vm71 = vcmask 1043456
    %v72 = vsel %vm71, %v55, 0.0
    %v73 = vrot.slane %v72, 4
    %v74 = vadd.f32 %v72, %v73
    %v75 = vrot.slane %v74, 2
    %v76 = vadd.f32 %v74, %v75
    %v77 = vrot.slane %v76, 1
    %v78 = vadd.f32 %v76, %v77
    %v79 = vsel %vm71, %v63, 0.0
    %v80 = vrot.slane %v79, 4
    %v81 = vadd.f32 %v79, %v80
    %v82 = vrot.slane %v81, 2
    %v83 = vadd.f32 %v81, %v82
    %v84 = vrot.slane %v83, 1
    %v85 = vadd.f32 %v83, %v84
    %v86 = vsel %vm71, %v56, 0.0
    %v87 = vrot.slane %v86, 4
    %v88 = vadd.f32 %v86, %v87
    %v89 = vrot.slane %v88, 2
    %v90 = vadd.f32 %v88, %v89
    %v91 = vrot.slane %v90, 1
    %v92 = vadd.f32 %v90, %v91
    %v93 = vsel %vm71, %v64, 0.0
    %v94 = vrot.slane %v93, 4
    %v95 = vadd.f32 %v93, %v94
    %v96 = vrot.slane %v95, 2
    %v97 = vadd.f32 %v95, %v96
    %v98 = vrot.slane %v97, 1
    %v99 = vadd.f32 %v97, %v98
    %v100 = vsel %vm71, %v57, 0.0
    %v101 = vrot.slane %v100, 4
    %v102 = vadd.f32 %v100, %v101
    %v103 = vrot.slane %v102, 2
    %v104 = vadd.f32 %v102, %v103
    %v105 = vrot.slane %v104, 1
    %v106 = vadd.f32 %v104, %v105
    %v107 = vsel %vm71, %v65, 0.0
    %v108 = vrot.slane %v107, 4
    %v109 = vadd.f32 %v107, %v108
    %v110 = vrot.slane %v109, 2
    %v111 = vadd.f32 %v109, %v110
    %v112 = vrot.slane %v111, 1
    %v113 = vadd.f32 %v111, %v112
    %v114 = vsel %vm71, %v58, 0.0
    %v115 = vrot.slane %v114, 4
    %v116 = vadd.f32 %v114, %v115
    %v117 = vrot.slane %v116, 2
    %v118 = vadd.f32 %v116, %v117
    %v119 = vrot.slane %v118, 1
    %v120 = vadd.f32 %v118, %v119
    %v121 = vsel %vm71, %v66, 0.0
    %v122 = vrot.slane %v121, 4
    %v123 = vadd.f32 %v121, %v122
    %v124 = vrot.slane %v123, 2
    %v125 = vadd.f32 %v123, %v124
    %v126 = vrot.slane %v125, 1
    %v127 = vadd.f32 %v125, %v126
    %v132 = vcombine.high %v46, %v46
    %v133 = vcombine.high %v47, %v47
    %v134 = vcombine.high %v48, %v48
    %v135 = vcombine.high %v49, %v49
    %vm136 = vcmask 31744
    %v138 = vsel %vm136, %v50, 0
    %v141 = vsel %vm136, %v51, 0
    %v144 = vsel %vm136, %v52, 0
    %v147 = vsel %vm136, %v53, 0
    %v149 = vsel %vm71, %v46, 0
    %v151 = vsel %vm71, %v132, 0
    %v153 = vsel %vm71, %v47, 0
    %v155 = vsel %vm71, %v133, 0
    %v157 = vsel %vm71, %v48, 0
    %v159 = vsel %vm71, %v134, 0
    %v161 = vsel %vm71, %v49, 0
    %v163 = vsel %vm71, %v135, 0
    %165 = vmatprep.subr.mxu0 %v151
    %166 = vmatpush1.msra.mxu0 %v149
    %167 = vmatprep.subr.mxu0 0.0
    %168 = vmatpush1.msra.mxu0 0.0
    %169 = vmatprep.subr.mxu0 0.0
    %170 = vmatpush1.msra.mxu0 0.0
    %171 = vmatprep.subr.mxu0 0.0
    %172 = vmatpush1.msra.mxu0 0.0
    %173 = vmatprep.subr.mxu0 0.0
    %174 = vmatpush1.msra.mxu0 0.0
    %175 = vmatprep.subr.mxu0 0.0
    %176 = vmatpush1.msra.mxu0 0.0
    %177 = vmatprep.subr.mxu0 0.0
    %178 = vmatpush1.msra.mxu0 0.0
    %179 = vmatprep.subr.mxu0 0.0
    %180 = vmatpush1.msra.mxu0 0.0
    %181 = vmatprep.subr.mxu0 0.0
    %182 = vmatpush1.msra.mxu0 0.0
    %183 = vmatprep.subr.mxu0 0.0
    %184 = vmatpush1.msra.mxu0 0.0
    %185 = vmatprep.subr.mxu0 0.0
    %186 = vmatpush1.msra.mxu0 0.0
    %187 = vmatprep.subr.mxu0 0.0
    %188 = vmatpush1.msra.mxu0 0.0
    %189 = vmatprep.subr.mxu0 0.0
    %190 = vmatpush1.msra.mxu0 0.0
    %191 = vmatprep.subr.mxu0 0.0
    %192 = vmatpush1.msra.mxu0 0.0
    %193 = vmatprep.subr.mxu0 0.0
    %194 = vmatpush1.msra.mxu0 0.0
    %195 = vmatprep.subr.mxu0 0.0
    %196 = vmatpush1.msra.mxu0 0.0
    %197 = vmatprep.subr.mxu0 0.0
    %198 = vmatpush1.msra.mxu0 0.0
    %199 = vmatprep.subr.mxu0 0.0
    %200 = vmatpush1.msra.mxu0 0.0
    %201 = vmatprep.subr.mxu0 0.0
    %202 = vmatpush1.msra.mxu0 0.0
    %203 = vmatprep.subr.mxu0 0.0
    %204 = vmatpush1.msra.mxu0 0.0
    %205 = vmatprep.subr.mxu0 0.0
    %206 = vmatpush1.msra.mxu0 0.0
    %207 = vmatprep.subr.mxu0 0.0
    %208 = vmatpush1.msra.mxu0 0.0
    %209 = vmatprep.subr.mxu0 0.0
    %210 = vmatpush1.msra.mxu0 0.0
    %211 = vmatprep.subr.mxu0 0.0
    %212 = vmatpush1.msra.mxu0 0.0
    %213 = vmatprep.subr.mxu0 0.0
    %214 = vmatpush1.msra.mxu0 0.0
    %215 = vmatprep.subr.mxu0 0.0
    %216 = vmatpush1.msra.mxu0 0.0
    %217 = vmatprep.subr.mxu0 0.0
    %218 = vmatpush1.msra.mxu0 0.0
    %219 = vmatprep.subr.mxu0 0.0
    %220 = vmatpush1.msra.mxu0 0.0
    %221 = vmatprep.subr.mxu0 0.0
    %222 = vmatpush1.msra.mxu0 0.0
    %223 = vmatprep.subr.mxu0 0.0
    %224 = vmatpush1.msra.mxu0 0.0
    %225 = vmatprep.subr.mxu0 0.0
    %226 = vmatpush1.msra.mxu0 0.0
    %227 = vmatprep.subr.mxu0 0.0
    %228 = vmatpush1.msra.mxu0 0.0
    %229 = vmatprep.mubr.f32.mxu0 0.0
    %230 = vmatmul.mubr.f32.gmra.mrb[0].mxu0 %v138
    %v231 = vpop.f32.mrb[0].mxu0
    %v232 = vadd.f32 0.0, %v231
    %v233 = vpop.f32.mrb[0].mxu0
    %v234 = vadd.f32 0.0, %v233
    %235 = vmatprep.mubr.f32.mxu0 0.0
    %236 = vmatmul.mubr.f32.gmra.mrb[0].mxu0 %v141
    %v237 = vpop.f32.mrb[0].mxu0
    %v238 = vadd.f32 0.0, %v237
    %v239 = vpop.f32.mrb[0].mxu0
    %v240 = vadd.f32 0.0, %v239
    %241 = vmatprep.mubr.f32.mxu0 0.0
    %242 = vmatmul.mubr.f32.gmra.mrb[0].mxu0 %v144
    %v243 = vpop.f32.mrb[0].mxu0
    %v244 = vadd.f32 0.0, %v243
    %v245 = vpop.f32.mrb[0].mxu0
    %v246 = vadd.f32 0.0, %v245
    %247 = vmatprep.mubr.f32.mxu0 0.0
    %248 = vmatmul.mubr.f32.gmra.mrb[0].mxu0 %v147
    %v249 = vpop.f32.mrb[0].mxu0
    %v250 = vadd.f32 0.0, %v249
    %v251 = vpop.f32.mrb[0].mxu0
    %v252 = vadd.f32 0.0, %v251
    %253 = vdwg.mxu0
    %254 = vmatprep.subr.mxu0 %v155
    %255 = vmatpush1.msra.mxu0 %v153
    %256 = vmatprep.subr.mxu0 0.0
    %257 = vmatpush1.msra.mxu0 0.0
    %258 = vmatprep.subr.mxu0 0.0
    %259 = vmatpush1.msra.mxu0 0.0
    %260 = vmatprep.subr.mxu0 0.0
    %261 = vmatpush1.msra.mxu0 0.0
    %262 = vmatprep.subr.mxu0 0.0
    %263 = vmatpush1.msra.mxu0 0.0
    %264 = vmatprep.subr.mxu0 0.0
    %265 = vmatpush1.msra.mxu0 0.0
    %266 = vmatprep.subr.mxu0 0.0
    %267 = vmatpush1.msra.mxu0 0.0
    %268 = vmatprep.subr.mxu0 0.0
    %269 = vmatpush1.msra.mxu0 0.0
    %270 = vmatprep.subr.mxu0 0.0
    %271 = vmatpush1.msra.mxu0 0.0
    %272 = vmatprep.subr.mxu0 0.0
    %273 = vmatpush1.msra.mxu0 0.0
    %274 = vmatprep.subr.mxu0 0.0
    %275 = vmatpush1.msra.mxu0 0.0
    %276 = vmatprep.subr.mxu0 0.0
    %277 = vmatpush1.msra.mxu0 0.0
    %278 = vmatprep.subr.mxu0 0.0
    %279 = vmatpush1.msra.mxu0 0.0
    %280 = vmatprep.subr.mxu0 0.0
    %281 = vmatpush1.msra.mxu0 0.0
    %282 = vmatprep.subr.mxu0 0.0
    %283 = vmatpush1.msra.mxu0 0.0
    %284 = vmatprep.subr.mxu0 0.0
    %285 = vmatpush1.msra.mxu0 0.0
    %286 = vmatprep.subr.mxu0 0.0
    %287 = vmatpush1.msra.mxu0 0.0
    %288 = vmatprep.subr.mxu0 0.0
    %289 = vmatpush1.msra.mxu0 0.0
    %290 = vmatprep.subr.mxu0 0.0
    %291 = vmatpush1.msra.mxu0 0.0
    %292 = vmatprep.subr.mxu0 0.0
    %293 = vmatpush1.msra.mxu0 0.0
    %294 = vmatprep.subr.mxu0 0.0
    %295 = vmatpush1.msra.mxu0 0.0
    %296 = vmatprep.subr.mxu0 0.0
    %297 = vmatpush1.msra.mxu0 0.0
    %298 = vmatprep.subr.mxu0 0.0
    %299 = vmatpush1.msra.mxu0 0.0
    %300 = vmatprep.subr.mxu0 0.0
    %301 = vmatpush1.msra.mxu0 0.0
    %302 = vmatprep.subr.mxu0 0.0
    %303 = vmatpush1.msra.mxu0 0.0
    %304 = vmatprep.subr.mxu0 0.0
    %305 = vmatpush1.msra.mxu0 0.0
    %306 = vmatprep.subr.mxu0 0.0
    %307 = vmatpush1.msra.mxu0 0.0
    %308 = vmatprep.subr.mxu0 0.0
    %309 = vmatpush1.msra.mxu0 0.0
    %310 = vmatprep.subr.mxu0 0.0
    %311 = vmatpush1.msra.mxu0 0.0
    %312 = vmatprep.subr.mxu0 0.0
    %313 = vmatpush1.msra.mxu0 0.0
    %314 = vmatprep.subr.mxu0 0.0
    %315 = vmatpush1.msra.mxu0 0.0
    %316 = vmatprep.subr.mxu0 0.0
    %317 = vmatpush1.msra.mxu0 0.0
    %318 = vmatprep.mubr.f32.mxu0 0.0
    %319 = vmatmul.mubr.f32.gmra.mrb[0].mxu0 %v138
    %v320 = vpop.f32.mrb[0].mxu0
    %v321 = vadd.f32 0.0, %v320
    %v322 = vpop.f32.mrb[0].mxu0
    %v323 = vadd.f32 0.0, %v322
    %324 = vmatprep.mubr.f32.mxu0 0.0
    %325 = vmatmul.mubr.f32.gmra.mrb[0].mxu0 %v141
    %v326 = vpop.f32.mrb[0].mxu0
    %v327 = vadd.f32 0.0, %v326
    %v328 = vpop.f32.mrb[0].mxu0
    %v329 = vadd.f32 0.0, %v328
    %330 = vmatprep.mubr.f32.mxu0 0.0
    %331 = vmatmul.mubr.f32.gmra.mrb[0].mxu0 %v144
    %v332 = vpop.f32.mrb[0].mxu0
    %v333 = vadd.f32 0.0, %v332
    %v334 = vpop.f32.mrb[0].mxu0
    %v335 = vadd.f32 0.0, %v334
    %336 = vmatprep.mubr.f32.mxu0 0.0
    %337 = vmatmul.mubr.f32.gmra.mrb[0].mxu0 %v147
    %v338 = vpop.f32.mrb[0].mxu0
    %v339 = vadd.f32 0.0, %v338
    %v340 = vpop.f32.mrb[0].mxu0
    %v341 = vadd.f32 0.0, %v340
    %342 = vdwg.mxu0
    %343 = vmatprep.subr.mxu0 %v159
    %344 = vmatpush1.msra.mxu0 %v157
    %345 = vmatprep.subr.mxu0 0.0
    %346 = vmatpush1.msra.mxu0 0.0
    %347 = vmatprep.subr.mxu0 0.0
    %348 = vmatpush1.msra.mxu0 0.0
    %349 = vmatprep.subr.mxu0 0.0
    %350 = vmatpush1.msra.mxu0 0.0
    %351 = vmatprep.subr.mxu0 0.0
    %352 = vmatpush1.msra.mxu0 0.0
    %353 = vmatprep.subr.mxu0 0.0
    %354 = vmatpush1.msra.mxu0 0.0
    %355 = vmatprep.subr.mxu0 0.0
    %356 = vmatpush1.msra.mxu0 0.0
    %357 = vmatprep.subr.mxu0 0.0
    %358 = vmatpush1.msra.mxu0 0.0
    %359 = vmatprep.subr.mxu0 0.0
    %360 = vmatpush1.msra.mxu0 0.0
    %361 = vmatprep.subr.mxu0 0.0
    %362 = vmatpush1.msra.mxu0 0.0
    %363 = vmatprep.subr.mxu0 0.0
    %364 = vmatpush1.msra.mxu0 0.0
    %365 = vmatprep.subr.mxu0 0.0
    %366 = vmatpush1.msra.mxu0 0.0
    %367 = vmatprep.subr.mxu0 0.0
    %368 = vmatpush1.msra.mxu0 0.0
    %369 = vmatprep.subr.mxu0 0.0
    %370 = vmatpush1.msra.mxu0 0.0
    %371 = vmatprep.subr.mxu0 0.0
    %372 = vmatpush1.msra.mxu0 0.0
    %373 = vmatprep.subr.mxu0 0.0
    %374 = vmatpush1.msra.mxu0 0.0
    %375 = vmatprep.subr.mxu0 0.0
    %376 = vmatpush1.msra.mxu0 0.0
    %377 = vmatprep.subr.mxu0 0.0
    %378 = vmatpush1.msra.mxu0 0.0
    %379 = vmatprep.subr.mxu0 0.0
    %380 = vmatpush1.msra.mxu0 0.0
    %381 = vmatprep.subr.mxu0 0.0
    %382 = vmatpush1.msra.mxu0 0.0
    %383 = vmatprep.subr.mxu0 0.0
    %384 = vmatpush1.msra.mxu0 0.0
    %385 = vmatprep.subr.mxu0 0.0
    %386 = vmatpush1.msra.mxu0 0.0
    %387 = vmatprep.subr.mxu0 0.0
    %388 = vmatpush1.msra.mxu0 0.0
    %389 = vmatprep.subr.mxu0 0.0
    %390 = vmatpush1.msra.mxu0 0.0
    %391 = vmatprep.subr.mxu0 0.0
    %392 = vmatpush1.msra.mxu0 0.0
    %393 = vmatprep.subr.mxu0 0.0
    %394 = vmatpush1.msra.mxu0 0.0
    %395 = vmatprep.subr.mxu0 0.0
    %396 = vmatpush1.msra.mxu0 0.0
    %397 = vmatprep.subr.mxu0 0.0
    %398 = vmatpush1.msra.mxu0 0.0
    %399 = vmatprep.subr.mxu0 0.0
    %400 = vmatpush1.msra.mxu0 0.0
    %401 = vmatprep.subr.mxu0 0.0
    %402 = vmatpush1.msra.mxu0 0.0
    %403 = vmatprep.subr.mxu0 0.0
    %404 = vmatpush1.msra.mxu0 0.0
    %405 = vmatprep.subr.mxu0 0.0
    %406 = vmatpush1.msra.mxu0 0.0
    %407 = vmatprep.mubr.f32.mxu0 0.0
    %408 = vmatmul.mubr.f32.gmra.mrb[0].mxu0 %v138
    %v409 = vpop.f32.mrb[0].mxu0
    %v410 = vadd.f32 0.0, %v409
    %v411 = vpop.f32.mrb[0].mxu0
    %v412 = vadd.f32 0.0, %v411
    %413 = vmatprep.mubr.f32.mxu0 0.0
    %414 = vmatmul.mubr.f32.gmra.mrb[0].mxu0 %v141
    %v415 = vpop.f32.mrb[0].mxu0
    %v416 = vadd.f32 0.0, %v415
    %v417 = vpop.f32.mrb[0].mxu0
    %v418 = vadd.f32 0.0, %v417
    %419 = vmatprep.mubr.f32.mxu0 0.0
    %420 = vmatmul.mubr.f32.gmra.mrb[0].mxu0 %v144
    %v421 = vpop.f32.mrb[0].mxu0
    %v422 = vadd.f32 0.0, %v421
    %v423 = vpop.f32.mrb[0].mxu0
    %v424 = vadd.f32 0.0, %v423
    %425 = vmatprep.mubr.f32.mxu0 0.0
    %426 = vmatmul.mubr.f32.gmra.mrb[0].mxu0 %v147
    %v427 = vpop.f32.mrb[0].mxu0
    %v428 = vadd.f32 0.0, %v427
    %v429 = vpop.f32.mrb[0].mxu0
    %v430 = vadd.f32 0.0, %v429
    %431 = vdwg.mxu0
    %432 = vmatprep.subr.mxu0 %v163
    %433 = vmatpush1.msra.mxu0 %v161
    %434 = vmatprep.subr.mxu0 0.0
    %435 = vmatpush1.msra.mxu0 0.0
    %436 = vmatprep.subr.mxu0 0.0
    %437 = vmatpush1.msra.mxu0 0.0
    %438 = vmatprep.subr.mxu0 0.0
    %439 = vmatpush1.msra.mxu0 0.0
    %440 = vmatprep.subr.mxu0 0.0
    %441 = vmatpush1.msra.mxu0 0.0
    %442 = vmatprep.subr.mxu0 0.0
    %443 = vmatpush1.msra.mxu0 0.0
    %444 = vmatprep.subr.mxu0 0.0
    %445 = vmatpush1.msra.mxu0 0.0
    %446 = vmatprep.subr.mxu0 0.0
    %447 = vmatpush1.msra.mxu0 0.0
    %448 = vmatprep.subr.mxu0 0.0
    %449 = vmatpush1.msra.mxu0 0.0
    %450 = vmatprep.subr.mxu0 0.0
    %451 = vmatpush1.msra.mxu0 0.0
    %452 = vmatprep.subr.mxu0 0.0
    %453 = vmatpush1.msra.mxu0 0.0
    %454 = vmatprep.subr.mxu0 0.0
    %455 = vmatpush1.msra.mxu0 0.0
    %456 = vmatprep.subr.mxu0 0.0
    %457 = vmatpush1.msra.mxu0 0.0
    %458 = vmatprep.subr.mxu0 0.0
    %459 = vmatpush1.msra.mxu0 0.0
    %460 = vmatprep.subr.mxu0 0.0
    %461 = vmatpush1.msra.mxu0 0.0
    %462 = vmatprep.subr.mxu0 0.0
    %463 = vmatpush1.msra.mxu0 0.0
    %464 = vmatprep.subr.mxu0 0.0
    %465 = vmatpush1.msra.mxu0 0.0
    %466 = vmatprep.subr.mxu0 0.0
    %467 = vmatpush1.msra.mxu0 0.0
    %468 = vmatprep.subr.mxu0 0.0
    %469 = vmatpush1.msra.mxu0 0.0
    %470 = vmatprep.subr.mxu0 0.0
    %471 = vmatpush1.msra.mxu0 0.0
    %472 = vmatprep.subr.mxu0 0.0
    %473 = vmatpush1.msra.mxu0 0.0
    %474 = vmatprep.subr.mxu0 0.0
    %475 = vmatpush1.msra.mxu0 0.0
    %476 = vmatprep.subr.mxu0 0.0
    %477 = vmatpush1.msra.mxu0 0.0
    %478 = vmatprep.subr.mxu0 0.0
    %479 = vmatpush1.msra.mxu0 0.0
    %480 = vmatprep.subr.mxu0 0.0
    %481 = vmatpush1.msra.mxu0 0.0
    %482 = vmatprep.subr.mxu0 0.0
    %483 = vmatpush1.msra.mxu0 0.0
    %484 = vmatprep.subr.mxu0 0.0
    %485 = vmatpush1.msra.mxu0 0.0
    %486 = vmatprep.subr.mxu0 0.0
    %487 = vmatpush1.msra.mxu0 0.0
    %488 = vmatprep.subr.mxu0 0.0
    %489 = vmatpush1.msra.mxu0 0.0
    %490 = vmatprep.subr.mxu0 0.0
    %491 = vmatpush1.msra.mxu0 0.0
    %492 = vmatprep.subr.mxu0 0.0
    %493 = vmatpush1.msra.mxu0 0.0
    %494 = vmatprep.subr.mxu0 0.0
    %495 = vmatpush1.msra.mxu0 0.0
    %496 = vmatprep.mubr.f32.mxu0 0.0
    %497 = vmatmul.mubr.f32.gmra.mrb[0].mxu0 %v138
    %v498 = vpop.f32.mrb[0].mxu0
    %v499 = vadd.f32 0.0, %v498
    %v500 = vpop.f32.mrb[0].mxu0
    %v501 = vadd.f32 0.0, %v500
    %502 = vmatprep.mubr.f32.mxu0 0.0
    %503 = vmatmul.mubr.f32.gmra.mrb[0].mxu0 %v141
    %v504 = vpop.f32.mrb[0].mxu0
    %v505 = vadd.f32 0.0, %v504
    %v506 = vpop.f32.mrb[0].mxu0
    %v507 = vadd.f32 0.0, %v506
    %508 = vmatprep.mubr.f32.mxu0 0.0
    %509 = vmatmul.mubr.f32.gmra.mrb[0].mxu0 %v144
    %v510 = vpop.f32.mrb[0].mxu0
    %v511 = vadd.f32 0.0, %v510
    %v512 = vpop.f32.mrb[0].mxu0
    %v513 = vadd.f32 0.0, %v512
    %514 = vmatprep.mubr.f32.mxu0 0.0
    %515 = vmatmul.mubr.f32.gmra.mrb[0].mxu0 %v147
    %v516 = vpop.f32.mrb[0].mxu0
    %v517 = vadd.f32 0.0, %v516
    %v518 = vpop.f32.mrb[0].mxu0
    %v519 = vadd.f32 0.0, %v518
    %520 = vdwg.mxu0
    %v521 = vmul.f32 %v78, 0.5
    %v522 = vmul.f32 %v85, 0.5
    %v523 = vmul.f32 %v92, 0.5
    %v524 = vmul.f32 %v99, 0.5
    %v525 = vmul.f32 %v106, 0.5
    %v526 = vmul.f32 %v113, 0.5
    %v527 = vmul.f32 %v120, 0.5
    %v528 = vmul.f32 %v127, 0.5
    %v529 = vsub.f32 %v232, %v521
    %v530 = vsub.f32 %v234, %v522
    %v531 = vsub.f32 %v321, %v523
    %v532 = vsub.f32 %v323, %v524
    %v533 = vsub.f32 %v410, %v525
    %v534 = vsub.f32 %v412, %v526
    %v535 = vsub.f32 %v499, %v527
    %v536 = vsub.f32 %v501, %v528
    %v537 = vsub.f32 %v238, %v521
    %v538 = vsub.f32 %v240, %v522
    %v539 = vsub.f32 %v327, %v523
    %v540 = vsub.f32 %v329, %v524
    %v541 = vsub.f32 %v416, %v525
    %v542 = vsub.f32 %v418, %v526
    %v543 = vsub.f32 %v505, %v527
    %v544 = vsub.f32 %v507, %v528
    %v545 = vsub.f32 %v244, %v521
    %v546 = vsub.f32 %v246, %v522
    %v547 = vsub.f32 %v333, %v523
    %v548 = vsub.f32 %v335, %v524
    %v549 = vsub.f32 %v422, %v525
    %v550 = vsub.f32 %v424, %v526
    %v551 = vsub.f32 %v511, %v527
    %v552 = vsub.f32 %v513, %v528
    %v553 = vsub.f32 %v250, %v521
    %v554 = vsub.f32 %v252, %v522
    %v555 = vsub.f32 %v339, %v523
    %v556 = vsub.f32 %v341, %v524
    %v557 = vsub.f32 %v428, %v525
    %v558 = vsub.f32 %v430, %v526
    %v559 = vsub.f32 %v517, %v527
    %v560 = vsub.f32 %v519, %v528
    %v561 = vmul.f32 %v529, 1.442695
    %v562 = vpow.pop %v561
    %v563 = vmul.f32 %v530, 1.442695
    %v564 = vpow.pop %v563
    %v565 = vmul.f32 %v531, 1.442695
    %v566 = vpow.pop %v565
    %v567 = vmul.f32 %v532, 1.442695
    %v568 = vpow.pop %v567
    %v569 = vmul.f32 %v533, 1.442695
    %v570 = vpow.pop %v569
    %v571 = vmul.f32 %v534, 1.442695
    %v572 = vpow.pop %v571
    %v573 = vmul.f32 %v535, 1.442695
    %v574 = vpow.pop %v573
    %v575 = vmul.f32 %v536, 1.442695
    %v576 = vpow.pop %v575
    %v577 = vmul.f32 %v537, 1.442695
    %v578 = vpow.pop %v577
    %v579 = vmul.f32 %v538, 1.442695
    %v580 = vpow.pop %v579
    %v581 = vmul.f32 %v539, 1.442695
    %v582 = vpow.pop %v581
    %v583 = vmul.f32 %v540, 1.442695
    %v584 = vpow.pop %v583
    %v585 = vmul.f32 %v541, 1.442695
    %v586 = vpow.pop %v585
    %v587 = vmul.f32 %v542, 1.442695
    %v588 = vpow.pop %v587
    %v589 = vmul.f32 %v543, 1.442695
    %v590 = vpow.pop %v589
    %v591 = vmul.f32 %v544, 1.442695
    %v592 = vpow.pop %v591
    %v593 = vmul.f32 %v545, 1.442695
    %v594 = vpow.pop %v593
    %v595 = vmul.f32 %v546, 1.442695
    %v596 = vpow.pop %v595
    %v597 = vmul.f32 %v547, 1.442695
    %v598 = vpow.pop %v597
    %v599 = vmul.f32 %v548, 1.442695
    %v600 = vpow.pop %v599
    %v601 = vmul.f32 %v549, 1.442695
    %v602 = vpow.pop %v601
    %v603 = vmul.f32 %v550, 1.442695
    %v604 = vpow.pop %v603
    %v605 = vmul.f32 %v551, 1.442695
    %v606 = vpow.pop %v605
    %v607 = vmul.f32 %v552, 1.442695
    %v608 = vpow.pop %v607
    %v609 = vmul.f32 %v553, 1.442695
    %v610 = vpow.pop %v609
    %v611 = vmul.f32 %v554, 1.442695
    %v612 = vpow.pop %v611
    %v613 = vmul.f32 %v555, 1.442695
    %v614 = vpow.pop %v613
    %v615 = vmul.f32 %v556, 1.442695
    %v616 = vpow.pop %v615
    %v617 = vmul.f32 %v557, 1.442695
    %v618 = vpow.pop %v617
    %v619 = vmul.f32 %v558, 1.442695
    %v620 = vpow.pop %v619
    %v621 = vmul.f32 %v559, 1.442695
    %v622 = vpow.pop %v621
    %v623 = vmul.f32 %v560, 1.442695
    %v624 = vpow.pop %v623
    %vm625 = vcmask 261120
    %v627 = vsel %vm625, 1.0, 0
    %629 = vmatprep.subr.mxu0 %v564
    %630 = vmatpush1.msra.mxu0 %v562
    %631 = vmatprep.subr.mxu0 %v580
    %632 = vmatpush1.msra.mxu0 %v578
    %633 = vmatprep.subr.mxu0 %v596
    %634 = vmatpush1.msra.mxu0 %v594
    %635 = vmatprep.subr.mxu0 %v612
    %636 = vmatpush1.msra.mxu0 %v610
    %637 = vmatprep.subr.mxu0 0.0
    %638 = vmatpush1.msra.mxu0 0.0
    %639 = vmatprep.subr.mxu0 0.0
    %640 = vmatpush1.msra.mxu0 0.0
    %641 = vmatprep.subr.mxu0 0.0
    %642 = vmatpush1.msra.mxu0 0.0
    %643 = vmatprep.subr.mxu0 0.0
    %644 = vmatpush1.msra.mxu0 0.0
    %645 = vmatprep.subr.mxu0 0.0
    %646 = vmatpush1.msra.mxu0 0.0
    %647 = vmatprep.subr.mxu0 0.0
    %648 = vmatpush1.msra.mxu0 0.0
    %649 = vmatprep.subr.mxu0 0.0
    %650 = vmatpush1.msra.mxu0 0.0
    %651 = vmatprep.subr.mxu0 0.0
    %652 = vmatpush1.msra.mxu0 0.0
    %653 = vmatprep.subr.mxu0 0.0
    %654 = vmatpush1.msra.mxu0 0.0
    %655 = vmatprep.subr.mxu0 0.0
    %656 = vmatpush1.msra.mxu0 0.0
    %657 = vmatprep.subr.mxu0 0.0
    %658 = vmatpush1.msra.mxu0 0.0
    %659 = vmatprep.subr.mxu0 0.0
    %660 = vmatpush1.msra.mxu0 0.0
    %661 = vmatprep.subr.mxu0 0.0
    %662 = vmatpush1.msra.mxu0 0.0
    %663 = vmatprep.subr.mxu0 0.0
    %664 = vmatpush1.msra.mxu0 0.0
    %665 = vmatprep.subr.mxu0 0.0
    %666 = vmatpush1.msra.mxu0 0.0
    %667 = vmatprep.subr.mxu0 0.0
    %668 = vmatpush1.msra.mxu0 0.0
    %669 = vmatprep.subr.mxu0 0.0
    %670 = vmatpush1.msra.mxu0 0.0
    %671 = vmatprep.subr.mxu0 0.0
    %672 = vmatpush1.msra.mxu0 0.0
    %673 = vmatprep.subr.mxu0 0.0
    %674 = vmatpush1.msra.mxu0 0.0
    %675 = vmatprep.subr.mxu0 0.0
    %676 = vmatpush1.msra.mxu0 0.0
    %677 = vmatprep.subr.mxu0 0.0
    %678 = vmatpush1.msra.mxu0 0.0
    %679 = vmatprep.subr.mxu0 0.0
    %680 = vmatpush1.msra.mxu0 0.0
    %681 = vmatprep.subr.mxu0 0.0
    %682 = vmatpush1.msra.mxu0 0.0
    %683 = vmatprep.subr.mxu0 0.0
    %684 = vmatpush1.msra.mxu0 0.0
    %685 = vmatprep.subr.mxu0 0.0
    %686 = vmatpush1.msra.mxu0 0.0
    %687 = vmatprep.subr.mxu0 0.0
    %688 = vmatpush1.msra.mxu0 0.0
    %689 = vmatprep.subr.mxu0 0.0
    %690 = vmatpush1.msra.mxu0 0.0
    %691 = vmatprep.subr.mxu0 0.0
    %692 = vmatpush1.msra.mxu0 0.0
    %693 = vmatprep.mubr.f32.mxu0 0.0
    %694 = vmatmul.mubr.f32.gmra.mrb[0].mxu0 %v627
    %v695 = vpop.f32.mrb[0].mxu0
    %v696 = vadd.f32 0.0, %v695
    %v697 = vpop.f32.mrb[0].mxu0
    %v698 = vadd.f32 0.0, %v697
    %699 = vdwg.mxu0
    %700 = vmatprep.subr.mxu0 %v568
    %701 = vmatpush1.msra.mxu0 %v566
    %702 = vmatprep.subr.mxu0 %v584
    %703 = vmatpush1.msra.mxu0 %v582
    %704 = vmatprep.subr.mxu0 %v600
    %705 = vmatpush1.msra.mxu0 %v598
    %706 = vmatprep.subr.mxu0 %v616
    %707 = vmatpush1.msra.mxu0 %v614
    %708 = vmatprep.subr.mxu0 0.0
    %709 = vmatpush1.msra.mxu0 0.0
    %710 = vmatprep.subr.mxu0 0.0
    %711 = vmatpush1.msra.mxu0 0.0
    %712 = vmatprep.subr.mxu0 0.0
    %713 = vmatpush1.msra.mxu0 0.0
    %714 = vmatprep.subr.mxu0 0.0
    %715 = vmatpush1.msra.mxu0 0.0
    %716 = vmatprep.subr.mxu0 0.0
    %717 = vmatpush1.msra.mxu0 0.0
    %718 = vmatprep.subr.mxu0 0.0
    %719 = vmatpush1.msra.mxu0 0.0
    %720 = vmatprep.subr.mxu0 0.0
    %721 = vmatpush1.msra.mxu0 0.0
    %722 = vmatprep.subr.mxu0 0.0
    %723 = vmatpush1.msra.mxu0 0.0
    %724 = vmatprep.subr.mxu0 0.0
    %725 = vmatpush1.msra.mxu0 0.0
    %726 = vmatprep.subr.mxu0 0.0
    %727 = vmatpush1.msra.mxu0 0.0
    %728 = vmatprep.subr.mxu0 0.0
    %729 = vmatpush1.msra.mxu0 0.0
    %730 = vmatprep.subr.mxu0 0.0
    %731 = vmatpush1.msra.mxu0 0.0
    %732 = vmatprep.subr.mxu0 0.0
    %733 = vmatpush1.msra.mxu0 0.0
    %734 = vmatprep.subr.mxu0 0.0
    %735 = vmatpush1.msra.mxu0 0.0
    %736 = vmatprep.subr.mxu0 0.0
    %737 = vmatpush1.msra.mxu0 0.0
    %738 = vmatprep.subr.mxu0 0.0
    %739 = vmatpush1.msra.mxu0 0.0
    %740 = vmatprep.subr.mxu0 0.0
    %741 = vmatpush1.msra.mxu0 0.0
    %742 = vmatprep.subr.mxu0 0.0
    %743 = vmatpush1.msra.mxu0 0.0
    %744 = vmatprep.subr.mxu0 0.0
    %745 = vmatpush1.msra.mxu0 0.0
    %746 = vmatprep.subr.mxu0 0.0
    %747 = vmatpush1.msra.mxu0 0.0
    %748 = vmatprep.subr.mxu0 0.0
    %749 = vmatpush1.msra.mxu0 0.0
    %750 = vmatprep.subr.mxu0 0.0
    %751 = vmatpush1.msra.mxu0 0.0
    %752 = vmatprep.subr.mxu0 0.0
    %753 = vmatpush1.msra.mxu0 0.0
    %754 = vmatprep.subr.mxu0 0.0
    %755 = vmatpush1.msra.mxu0 0.0
    %756 = vmatprep.subr.mxu0 0.0
    %757 = vmatpush1.msra.mxu0 0.0
    %758 = vmatprep.subr.mxu0 0.0
    %759 = vmatpush1.msra.mxu0 0.0
    %760 = vmatprep.subr.mxu0 0.0
    %761 = vmatpush1.msra.mxu0 0.0
    %762 = vmatprep.subr.mxu0 0.0
    %763 = vmatpush1.msra.mxu0 0.0
    %764 = vmatprep.mubr.f32.mxu0 0.0
    %765 = vmatmul.mubr.f32.gmra.mrb[0].mxu0 %v627
    %v766 = vpop.f32.mrb[0].mxu0
    %v767 = vadd.f32 0.0, %v766
    %v768 = vpop.f32.mrb[0].mxu0
    %v769 = vadd.f32 0.0, %v768
    %770 = vdwg.mxu0
    %771 = vmatprep.subr.mxu0 %v572
    %772 = vmatpush1.msra.mxu0 %v570
    %773 = vmatprep.subr.mxu0 %v588
    %774 = vmatpush1.msra.mxu0 %v586
    %775 = vmatprep.subr.mxu0 %v604
    %776 = vmatpush1.msra.mxu0 %v602
    %777 = vmatprep.subr.mxu0 %v620
    %778 = vmatpush1.msra.mxu0 %v618
    %779 = vmatprep.subr.mxu0 0.0
    %780 = vmatpush1.msra.mxu0 0.0
    %781 = vmatprep.subr.mxu0 0.0
    %782 = vmatpush1.msra.mxu0 0.0
    %783 = vmatprep.subr.mxu0 0.0
    %784 = vmatpush1.msra.mxu0 0.0
    %785 = vmatprep.subr.mxu0 0.0
    %786 = vmatpush1.msra.mxu0 0.0
    %787 = vmatprep.subr.mxu0 0.0
    %788 = vmatpush1.msra.mxu0 0.0
    %789 = vmatprep.subr.mxu0 0.0
    %790 = vmatpush1.msra.mxu0 0.0
    %791 = vmatprep.subr.mxu0 0.0
    %792 = vmatpush1.msra.mxu0 0.0
    %793 = vmatprep.subr.mxu0 0.0
    %794 = vmatpush1.msra.mxu0 0.0
    %795 = vmatprep.subr.mxu0 0.0
    %796 = vmatpush1.msra.mxu0 0.0
    %797 = vmatprep.subr.mxu0 0.0
    %798 = vmatpush1.msra.mxu0 0.0
    %799 = vmatprep.subr.mxu0 0.0
    %800 = vmatpush1.msra.mxu0 0.0
    %801 = vmatprep.subr.mxu0 0.0
    %802 = vmatpush1.msra.mxu0 0.0
    %803 = vmatprep.subr.mxu0 0.0
    %804 = vmatpush1.msra.mxu0 0.0
    %805 = vmatprep.subr.mxu0 0.0
    %806 = vmatpush1.msra.mxu0 0.0
    %807 = vmatprep.subr.mxu0 0.0
    %808 = vmatpush1.msra.mxu0 0.0
    %809 = vmatprep.subr.mxu0 0.0
    %810 = vmatpush1.msra.mxu0 0.0
    %811 = vmatprep.subr.mxu0 0.0
    %812 = vmatpush1.msra.mxu0 0.0
    %813 = vmatprep.subr.mxu0 0.0
    %814 = vmatpush1.msra.mxu0 0.0
    %815 = vmatprep.subr.mxu0 0.0
    %816 = vmatpush1.msra.mxu0 0.0
    %817 = vmatprep.subr.mxu0 0.0
    %818 = vmatpush1.msra.mxu0 0.0
    %819 = vmatprep.subr.mxu0 0.0
    %820 = vmatpush1.msra.mxu0 0.0
    %821 = vmatprep.subr.mxu0 0.0
    %822 = vmatpush1.msra.mxu0 0.0
    %823 = vmatprep.subr.mxu0 0.0
    %824 = vmatpush1.msra.mxu0 0.0
    %825 = vmatprep.subr.mxu0 0.0
    %826 = vmatpush1.msra.mxu0 0.0
    %827 = vmatprep.subr.mxu0 0.0
    %828 = vmatpush1.msra.mxu0 0.0
    %829 = vmatprep.subr.mxu0 0.0
    %830 = vmatpush1.msra.mxu0 0.0
    %831 = vmatprep.subr.mxu0 0.0
    %832 = vmatpush1.msra.mxu0 0.0
    %833 = vmatprep.subr.mxu0 0.0
    %834 = vmatpush1.msra.mxu0 0.0
    %835 = vmatprep.mubr.f32.mxu0 0.0
    %836 = vmatmul.mubr.f32.gmra.mrb[0].mxu0 %v627
    %v837 = vpop.f32.mrb[0].mxu0
    %v838 = vadd.f32 0.0, %v837
    %v839 = vpop.f32.mrb[0].mxu0
    %v840 = vadd.f32 0.0, %v839
    %841 = vdwg.mxu0
    %842 = vmatprep.subr.mxu0 %v576
    %843 = vmatpush1.msra.mxu0 %v574
    %844 = vmatprep.subr.mxu0 %v592
    %845 = vmatpush1.msra.mxu0 %v590
    %846 = vmatprep.subr.mxu0 %v608
    %847 = vmatpush1.msra.mxu0 %v606
    %848 = vmatprep.subr.mxu0 %v624
    %849 = vmatpush1.msra.mxu0 %v622
    %850 = vmatprep.subr.mxu0 0.0
    %851 = vmatpush1.msra.mxu0 0.0
    %852 = vmatprep.subr.mxu0 0.0
    %853 = vmatpush1.msra.mxu0 0.0
    %854 = vmatprep.subr.mxu0 0.0
    %855 = vmatpush1.msra.mxu0 0.0
    %856 = vmatprep.subr.mxu0 0.0
    %857 = vmatpush1.msra.mxu0 0.0
    %858 = vmatprep.subr.mxu0 0.0
    %859 = vmatpush1.msra.mxu0 0.0
    %860 = vmatprep.subr.mxu0 0.0
    %861 = vmatpush1.msra.mxu0 0.0
    %862 = vmatprep.subr.mxu0 0.0
    %863 = vmatpush1.msra.mxu0 0.0
    %864 = vmatprep.subr.mxu0 0.0
    %865 = vmatpush1.msra.mxu0 0.0
    %866 = vmatprep.subr.mxu0 0.0
    %867 = vmatpush1.msra.mxu0 0.0
    %868 = vmatprep.subr.mxu0 0.0
    %869 = vmatpush1.msra.mxu0 0.0
    %870 = vmatprep.subr.mxu0 0.0
    %871 = vmatpush1.msra.mxu0 0.0
    %872 = vmatprep.subr.mxu0 0.0
    %873 = vmatpush1.msra.mxu0 0.0
    %874 = vmatprep.subr.mxu0 0.0
    %875 = vmatpush1.msra.mxu0 0.0
    %876 = vmatprep.subr.mxu0 0.0
    %877 = vmatpush1.msra.mxu0 0.0
    %878 = vmatprep.subr.mxu0 0.0
    %879 = vmatpush1.msra.mxu0 0.0
    %880 = vmatprep.subr.mxu0 0.0
    %881 = vmatpush1.msra.mxu0 0.0
    %882 = vmatprep.subr.mxu0 0.0
    %883 = vmatpush1.msra.mxu0 0.0
    %884 = vmatprep.subr.mxu0 0.0
    %885 = vmatpush1.msra.mxu0 0.0
    %886 = vmatprep.subr.mxu0 0.0
    %887 = vmatpush1.msra.mxu0 0.0
    %888 = vmatprep.subr.mxu0 0.0
    %889 = vmatpush1.msra.mxu0 0.0
    %890 = vmatprep.subr.mxu0 0.0
    %891 = vmatpush1.msra.mxu0 0.0
    %892 = vmatprep.subr.mxu0 0.0
    %893 = vmatpush1.msra.mxu0 0.0
    %894 = vmatprep.subr.mxu0 0.0
    %895 = vmatpush1.msra.mxu0 0.0
    %896 = vmatprep.subr.mxu0 0.0
    %897 = vmatpush1.msra.mxu0 0.0
    %898 = vmatprep.subr.mxu0 0.0
    %899 = vmatpush1.msra.mxu0 0.0
    %900 = vmatprep.subr.mxu0 0.0
    %901 = vmatpush1.msra.mxu0 0.0
    %902 = vmatprep.subr.mxu0 0.0
    %903 = vmatpush1.msra.mxu0 0.0
    %904 = vmatprep.subr.mxu0 0.0
    %905 = vmatpush1.msra.mxu0 0.0
    %906 = vmatprep.mubr.f32.mxu0 0.0
    %907 = vmatmul.mubr.f32.gmra.mrb[0].mxu0 %v627
    %v908 = vpop.f32.mrb[0].mxu0
    %v909 = vadd.f32 0.0, %v908
    %v910 = vpop.f32.mrb[0].mxu0
    %v911 = vadd.f32 0.0, %v910
    %912 = vdwg.mxu0
    %v914 = vsel %vm625, %v54, 0
    %916 = vmatprep.subr.mxu0 %v564
    %917 = vmatpush1.msra.mxu0 %v562
    %918 = vmatprep.subr.mxu0 %v580
    %919 = vmatpush1.msra.mxu0 %v578
    %920 = vmatprep.subr.mxu0 %v596
    %921 = vmatpush1.msra.mxu0 %v594
    %922 = vmatprep.subr.mxu0 %v612
    %923 = vmatpush1.msra.mxu0 %v610
    %924 = vmatprep.subr.mxu0 0.0
    %925 = vmatpush1.msra.mxu0 0.0
    %926 = vmatprep.subr.mxu0 0.0
    %927 = vmatpush1.msra.mxu0 0.0
    %928 = vmatprep.subr.mxu0 0.0
    %929 = vmatpush1.msra.mxu0 0.0
    %930 = vmatprep.subr.mxu0 0.0
    %931 = vmatpush1.msra.mxu0 0.0
    %932 = vmatprep.subr.mxu0 0.0
    %933 = vmatpush1.msra.mxu0 0.0
    %934 = vmatprep.subr.mxu0 0.0
    %935 = vmatpush1.msra.mxu0 0.0
    %936 = vmatprep.subr.mxu0 0.0
    %937 = vmatpush1.msra.mxu0 0.0
    %938 = vmatprep.subr.mxu0 0.0
    %939 = vmatpush1.msra.mxu0 0.0
    %940 = vmatprep.subr.mxu0 0.0
    %941 = vmatpush1.msra.mxu0 0.0
    %942 = vmatprep.subr.mxu0 0.0
    %943 = vmatpush1.msra.mxu0 0.0
    %944 = vmatprep.subr.mxu0 0.0
    %945 = vmatpush1.msra.mxu0 0.0
    %946 = vmatprep.subr.mxu0 0.0
    %947 = vmatpush1.msra.mxu0 0.0
    %948 = vmatprep.subr.mxu0 0.0
    %949 = vmatpush1.msra.mxu0 0.0
    %950 = vmatprep.subr.mxu0 0.0
    %951 = vmatpush1.msra.mxu0 0.0
    %952 = vmatprep.subr.mxu0 0.0
    %953 = vmatpush1.msra.mxu0 0.0
    %954 = vmatprep.subr.mxu0 0.0
    %955 = vmatpush1.msra.mxu0 0.0
    %956 = vmatprep.subr.mxu0 0.0
    %957 = vmatpush1.msra.mxu0 0.0
    %958 = vmatprep.subr.mxu0 0.0
    %959 = vmatpush1.msra.mxu0 0.0
    %960 = vmatprep.subr.mxu0 0.0
    %961 = vmatpush1.msra.mxu0 0.0
    %962 = vmatprep.subr.mxu0 0.0
    %963 = vmatpush1.msra.mxu0 0.0
    %964 = vmatprep.subr.mxu0 0.0
    %965 = vmatpush1.msra.mxu0 0.0
    %966 = vmatprep.subr.mxu0 0.0
    %967 = vmatpush1.msra.mxu0 0.0
    %968 = vmatprep.subr.mxu0 0.0
    %969 = vmatpush1.msra.mxu0 0.0
    %970 = vmatprep.subr.mxu0 0.0
    %971 = vmatpush1.msra.mxu0 0.0
    %972 = vmatprep.subr.mxu0 0.0
    %973 = vmatpush1.msra.mxu0 0.0
    %974 = vmatprep.subr.mxu0 0.0
    %975 = vmatpush1.msra.mxu0 0.0
    %976 = vmatprep.subr.mxu0 0.0
    %977 = vmatpush1.msra.mxu0 0.0
    %978 = vmatprep.subr.mxu0 0.0
    %979 = vmatpush1.msra.mxu0 0.0
    %980 = vmatprep.mubr.f32.mxu0 0.0
    %981 = vmatmul.mubr.f32.gmra.mrb[0].mxu0 %v914
    %v982 = vpop.f32.mrb[0].mxu0
    %v983 = vadd.f32 0.0, %v982
    %v984 = vpop.f32.mrb[0].mxu0
    %v985 = vadd.f32 0.0, %v984
    %986 = vdwg.mxu0
    %987 = vmatprep.subr.mxu0 %v568
    %988 = vmatpush1.msra.mxu0 %v566
    %989 = vmatprep.subr.mxu0 %v584
    %990 = vmatpush1.msra.mxu0 %v582
    %991 = vmatprep.subr.mxu0 %v600
    %992 = vmatpush1.msra.mxu0 %v598
    %993 = vmatprep.subr.mxu0 %v616
    %994 = vmatpush1.msra.mxu0 %v614
    %995 = vmatprep.subr.mxu0 0.0
    %996 = vmatpush1.msra.mxu0 0.0
    %997 = vmatprep.subr.mxu0 0.0
    %998 = vmatpush1.msra.mxu0 0.0
    %999 = vmatprep.subr.mxu0 0.0
    %1000 = vmatpush1.msra.mxu0 0.0
    %1001 = vmatprep.subr.mxu0 0.0
    %1002 = vmatpush1.msra.mxu0 0.0
    %1003 = vmatprep.subr.mxu0 0.0
    %1004 = vmatpush1.msra.mxu0 0.0
    %1005 = vmatprep.subr.mxu0 0.0
    %1006 = vmatpush1.msra.mxu0 0.0
    %1007 = vmatprep.subr.mxu0 0.0
    %1008 = vmatpush1.msra.mxu0 0.0
    %1009 = vmatprep.subr.mxu0 0.0
    %1010 = vmatpush1.msra.mxu0 0.0
    %1011 = vmatprep.subr.mxu0 0.0
    %1012 = vmatpush1.msra.mxu0 0.0
    %1013 = vmatprep.subr.mxu0 0.0
    %1014 = vmatpush1.msra.mxu0 0.0
    %1015 = vmatprep.subr.mxu0 0.0
    %1016 = vmatpush1.msra.mxu0 0.0
    %1017 = vmatprep.subr.mxu0 0.0
    %1018 = vmatpush1.msra.mxu0 0.0
    %1019 = vmatprep.subr.mxu0 0.0
    %1020 = vmatpush1.msra.mxu0 0.0
    %1021 = vmatprep.subr.mxu0 0.0
    %1022 = vmatpush1.msra.mxu0 0.0
    %1023 = vmatprep.subr.mxu0 0.0
    %1024 = vmatpush1.msra.mxu0 0.0
    %1025 = vmatprep.subr.mxu0 0.0
    %1026 = vmatpush1.msra.mxu0 0.0
    %1027 = vmatprep.subr.mxu0 0.0
    %1028 = vmatpush1.msra.mxu0 0.0
    %1029 = vmatprep.subr.mxu0 0.0
    %1030 = vmatpush1.msra.mxu0 0.0
    %1031 = vmatprep.subr.mxu0 0.0
    %1032 = vmatpush1.msra.mxu0 0.0
    %1033 = vmatprep.subr.mxu0 0.0
    %1034 = vmatpush1.msra.mxu0 0.0
    %1035 = vmatprep.subr.mxu0 0.0
    %1036 = vmatpush1.msra.mxu0 0.0
    %1037 = vmatprep.subr.mxu0 0.0
    %1038 = vmatpush1.msra.mxu0 0.0
    %1039 = vmatprep.subr.mxu0 0.0
    %1040 = vmatpush1.msra.mxu0 0.0
    %1041 = vmatprep.subr.mxu0 0.0
    %1042 = vmatpush1.msra.mxu0 0.0
    %1043 = vmatprep.subr.mxu0 0.0
    %1044 = vmatpush1.msra.mxu0 0.0
    %1045 = vmatprep.subr.mxu0 0.0
    %1046 = vmatpush1.msra.mxu0 0.0
    %1047 = vmatprep.subr.mxu0 0.0
    %1048 = vmatpush1.msra.mxu0 0.0
    %1049 = vmatprep.subr.mxu0 0.0
    %1050 = vmatpush1.msra.mxu0 0.0
    %1051 = vmatprep.mubr.f32.mxu0 0.0
    %1052 = vmatmul.mubr.f32.gmra.mrb[0].mxu0 %v914
    %v1053 = vpop.f32.mrb[0].mxu0
    %v1054 = vadd.f32 0.0, %v1053
    %v1055 = vpop.f32.mrb[0].mxu0
    %v1056 = vadd.f32 0.0, %v1055
    %1057 = vdwg.mxu0
    %1058 = vmatprep.subr.mxu0 %v572
    %1059 = vmatpush1.msra.mxu0 %v570
    %1060 = vmatprep.subr.mxu0 %v588
    %1061 = vmatpush1.msra.mxu0 %v586
    %1062 = vmatprep.subr.mxu0 %v604
    %1063 = vmatpush1.msra.mxu0 %v602
    %1064 = vmatprep.subr.mxu0 %v620
    %1065 = vmatpush1.msra.mxu0 %v618
    %1066 = vmatprep.subr.mxu0 0.0
    %1067 = vmatpush1.msra.mxu0 0.0
    %1068 = vmatprep.subr.mxu0 0.0
    %1069 = vmatpush1.msra.mxu0 0.0
    %1070 = vmatprep.subr.mxu0 0.0
    %1071 = vmatpush1.msra.mxu0 0.0
    %1072 = vmatprep.subr.mxu0 0.0
    %1073 = vmatpush1.msra.mxu0 0.0
    %1074 = vmatprep.subr.mxu0 0.0
    %1075 = vmatpush1.msra.mxu0 0.0
    %1076 = vmatprep.subr.mxu0 0.0
    %1077 = vmatpush1.msra.mxu0 0.0
    %1078 = vmatprep.subr.mxu0 0.0
    %1079 = vmatpush1.msra.mxu0 0.0
    %1080 = vmatprep.subr.mxu0 0.0
    %1081 = vmatpush1.msra.mxu0 0.0
    %1082 = vmatprep.subr.mxu0 0.0
    %1083 = vmatpush1.msra.mxu0 0.0
    %1084 = vmatprep.subr.mxu0 0.0
    %1085 = vmatpush1.msra.mxu0 0.0
    %1086 = vmatprep.subr.mxu0 0.0
    %1087 = vmatpush1.msra.mxu0 0.0
    %1088 = vmatprep.subr.mxu0 0.0
    %1089 = vmatpush1.msra.mxu0 0.0
    %1090 = vmatprep.subr.mxu0 0.0
    %1091 = vmatpush1.msra.mxu0 0.0
    %1092 = vmatprep.subr.mxu0 0.0
    %1093 = vmatpush1.msra.mxu0 0.0
    %1094 = vmatprep.subr.mxu0 0.0
    %1095 = vmatpush1.msra.mxu0 0.0
    %1096 = vmatprep.subr.mxu0 0.0
    %1097 = vmatpush1.msra.mxu0 0.0
    %1098 = vmatprep.subr.mxu0 0.0
    %1099 = vmatpush1.msra.mxu0 0.0
    %1100 = vmatprep.subr.mxu0 0.0
    %1101 = vmatpush1.msra.mxu0 0.0
    %1102 = vmatprep.subr.mxu0 0.0
    %1103 = vmatpush1.msra.mxu0 0.0
    %1104 = vmatprep.subr.mxu0 0.0
    %1105 = vmatpush1.msra.mxu0 0.0
    %1106 = vmatprep.subr.mxu0 0.0
    %1107 = vmatpush1.msra.mxu0 0.0
    %1108 = vmatprep.subr.mxu0 0.0
    %1109 = vmatpush1.msra.mxu0 0.0
    %1110 = vmatprep.subr.mxu0 0.0
    %1111 = vmatpush1.msra.mxu0 0.0
    %1112 = vmatprep.subr.mxu0 0.0
    %1113 = vmatpush1.msra.mxu0 0.0
    %1114 = vmatprep.subr.mxu0 0.0
    %1115 = vmatpush1.msra.mxu0 0.0
    %1116 = vmatprep.subr.mxu0 0.0
    %1117 = vmatpush1.msra.mxu0 0.0
    %1118 = vmatprep.subr.mxu0 0.0
    %1119 = vmatpush1.msra.mxu0 0.0
    %1120 = vmatprep.subr.mxu0 0.0
    %1121 = vmatpush1.msra.mxu0 0.0
    %1122 = vmatprep.mubr.f32.mxu0 0.0
    %1123 = vmatmul.mubr.f32.gmra.mrb[0].mxu0 %v914
    %v1124 = vpop.f32.mrb[0].mxu0
    %v1125 = vadd.f32 0.0, %v1124
    %v1126 = vpop.f32.mrb[0].mxu0
    %v1127 = vadd.f32 0.0, %v1126
    %1128 = vdwg.mxu0
    %1129 = vmatprep.subr.mxu0 %v576
    %1130 = vmatpush1.msra.mxu0 %v574
    %1131 = vmatprep.subr.mxu0 %v592
    %1132 = vmatpush1.msra.mxu0 %v590
    %1133 = vmatprep.subr.mxu0 %v608
    %1134 = vmatpush1.msra.mxu0 %v606
    %1135 = vmatprep.subr.mxu0 %v624
    %1136 = vmatpush1.msra.mxu0 %v622
    %1137 = vmatprep.subr.mxu0 0.0
    %1138 = vmatpush1.msra.mxu0 0.0
    %1139 = vmatprep.subr.mxu0 0.0
    %1140 = vmatpush1.msra.mxu0 0.0
    %1141 = vmatprep.subr.mxu0 0.0
    %1142 = vmatpush1.msra.mxu0 0.0
    %1143 = vmatprep.subr.mxu0 0.0
    %1144 = vmatpush1.msra.mxu0 0.0
    %1145 = vmatprep.subr.mxu0 0.0
    %1146 = vmatpush1.msra.mxu0 0.0
    %1147 = vmatprep.subr.mxu0 0.0
    %1148 = vmatpush1.msra.mxu0 0.0
    %1149 = vmatprep.subr.mxu0 0.0
    %1150 = vmatpush1.msra.mxu0 0.0
    %1151 = vmatprep.subr.mxu0 0.0
    %1152 = vmatpush1.msra.mxu0 0.0
    %1153 = vmatprep.subr.mxu0 0.0
    %1154 = vmatpush1.msra.mxu0 0.0
    %1155 = vmatprep.subr.mxu0 0.0
    %1156 = vmatpush1.msra.mxu0 0.0
    %1157 = vmatprep.subr.mxu0 0.0
    %1158 = vmatpush1.msra.mxu0 0.0
    %1159 = vmatprep.subr.mxu0 0.0
    %1160 = vmatpush1.msra.mxu0 0.0
    %1161 = vmatprep.subr.mxu0 0.0
    %1162 = vmatpush1.msra.mxu0 0.0
    %1163 = vmatprep.subr.mxu0 0.0
    %1164 = vmatpush1.msra.mxu0 0.0
    %1165 = vmatprep.subr.mxu0 0.0
    %1166 = vmatpush1.msra.mxu0 0.0
    %1167 = vmatprep.subr.mxu0 0.0
    %1168 = vmatpush1.msra.mxu0 0.0
    %1169 = vmatprep.subr.mxu0 0.0
    %1170 = vmatpush1.msra.mxu0 0.0
    %1171 = vmatprep.subr.mxu0 0.0
    %1172 = vmatpush1.msra.mxu0 0.0
    %1173 = vmatprep.subr.mxu0 0.0
    %1174 = vmatpush1.msra.mxu0 0.0
    %1175 = vmatprep.subr.mxu0 0.0
    %1176 = vmatpush1.msra.mxu0 0.0
    %1177 = vmatprep.subr.mxu0 0.0
    %1178 = vmatpush1.msra.mxu0 0.0
    %1179 = vmatprep.subr.mxu0 0.0
    %1180 = vmatpush1.msra.mxu0 0.0
    %1181 = vmatprep.subr.mxu0 0.0
    %1182 = vmatpush1.msra.mxu0 0.0
    %1183 = vmatprep.subr.mxu0 0.0
    %1184 = vmatpush1.msra.mxu0 0.0
    %1185 = vmatprep.subr.mxu0 0.0
    %1186 = vmatpush1.msra.mxu0 0.0
    %1187 = vmatprep.subr.mxu0 0.0
    %1188 = vmatpush1.msra.mxu0 0.0
    %1189 = vmatprep.subr.mxu0 0.0
    %1190 = vmatpush1.msra.mxu0 0.0
    %1191 = vmatprep.subr.mxu0 0.0
    %1192 = vmatpush1.msra.mxu0 0.0
    %1193 = vmatprep.mubr.f32.mxu0 0.0
    %1194 = vmatmul.mubr.f32.gmra.mrb[0].mxu0 %v914
    %v1195 = vpop.f32.mrb[0].mxu0
    %v1196 = vadd.f32 0.0, %v1195
    %v1197 = vpop.f32.mrb[0].mxu0
    %v1198 = vadd.f32 0.0, %v1197
    %1199 = vdwg.mxu0
    %v1200 = vmul.f32 %v529, %v562
    %v1201 = vmul.f32 %v530, %v564
    %v1202 = vmul.f32 %v531, %v566
    %v1203 = vmul.f32 %v532, %v568
    %v1204 = vmul.f32 %v533, %v570
    %v1205 = vmul.f32 %v534, %v572
    %v1206 = vmul.f32 %v535, %v574
    %v1207 = vmul.f32 %v536, %v576
    %v1208 = vmul.f32 %v537, %v578
    %v1209 = vmul.f32 %v538, %v580
    %v1210 = vmul.f32 %v539, %v582
    %v1211 = vmul.f32 %v540, %v584
    %v1212 = vmul.f32 %v541, %v586
    %v1213 = vmul.f32 %v542, %v588
    %v1214 = vmul.f32 %v543, %v590
    %v1215 = vmul.f32 %v544, %v592
    %v1216 = vmul.f32 %v545, %v594
    %v1217 = vmul.f32 %v546, %v596
    %v1218 = vmul.f32 %v547, %v598
    %v1219 = vmul.f32 %v548, %v600
    %v1220 = vmul.f32 %v549, %v602
    %v1221 = vmul.f32 %v550, %v604
    %v1222 = vmul.f32 %v551, %v606
    %v1223 = vmul.f32 %v552, %v608
    %v1224 = vmul.f32 %v553, %v610
    %v1225 = vmul.f32 %v554, %v612
    %v1226 = vmul.f32 %v555, %v614
    %v1227 = vmul.f32 %v556, %v616
    %v1228 = vmul.f32 %v557, %v618
    %v1229 = vmul.f32 %v558, %v620
    %v1230 = vmul.f32 %v559, %v622
    %v1231 = vmul.f32 %v560, %v624
    %1232 = vmatprep.subr.mxu0 %v1201
    %1233 = vmatpush1.msra.mxu0 %v1200
    %1234 = vmatprep.subr.mxu0 %v1209
    %1235 = vmatpush1.msra.mxu0 %v1208
    %1236 = vmatprep.subr.mxu0 %v1217
    %1237 = vmatpush1.msra.mxu0 %v1216
    %1238 = vmatprep.subr.mxu0 %v1225
    %1239 = vmatpush1.msra.mxu0 %v1224
    %1240 = vmatprep.subr.mxu0 0.0
    %1241 = vmatpush1.msra.mxu0 0.0
    %1242 = vmatprep.subr.mxu0 0.0
    %1243 = vmatpush1.msra.mxu0 0.0
    %1244 = vmatprep.subr.mxu0 0.0
    %1245 = vmatpush1.msra.mxu0 0.0
    %1246 = vmatprep.subr.mxu0 0.0
    %1247 = vmatpush1.msra.mxu0 0.0
    %1248 = vmatprep.subr.mxu0 0.0
    %1249 = vmatpush1.msra.mxu0 0.0
    %1250 = vmatprep.subr.mxu0 0.0
    %1251 = vmatpush1.msra.mxu0 0.0
    %1252 = vmatprep.subr.mxu0 0.0
    %1253 = vmatpush1.msra.mxu0 0.0
    %1254 = vmatprep.subr.mxu0 0.0
    %1255 = vmatpush1.msra.mxu0 0.0
    %1256 = vmatprep.subr.mxu0 0.0
    %1257 = vmatpush1.msra.mxu0 0.0
    %1258 = vmatprep.subr.mxu0 0.0
    %1259 = vmatpush1.msra.mxu0 0.0
    %1260 = vmatprep.subr.mxu0 0.0
    %1261 = vmatpush1.msra.mxu0 0.0
    %1262 = vmatprep.subr.mxu0 0.0
    %1263 = vmatpush1.msra.mxu0 0.0
    %1264 = vmatprep.subr.mxu0 0.0
    %1265 = vmatpush1.msra.mxu0 0.0
    %1266 = vmatprep.subr.mxu0 0.0
    %1267 = vmatpush1.msra.mxu0 0.0
    %1268 = vmatprep.subr.mxu0 0.0
    %1269 = vmatpush1.msra.mxu0 0.0
    %1270 = vmatprep.subr.mxu0 0.0
    %1271 = vmatpush1.msra.mxu0 0.0
    %1272 = vmatprep.subr.mxu0 0.0
    %1273 = vmatpush1.msra.mxu0 0.0
    %1274 = vmatprep.subr.mxu0 0.0
    %1275 = vmatpush1.msra.mxu0 0.0
    %1276 = vmatprep.subr.mxu0 0.0
    %1277 = vmatpush1.msra.mxu0 0.0
    %1278 = vmatprep.subr.mxu0 0.0
    %1279 = vmatpush1.msra.mxu0 0.0
    %1280 = vmatprep.subr.mxu0 0.0
    %1281 = vmatpush1.msra.mxu0 0.0
    %1282 = vmatprep.subr.mxu0 0.0
    %1283 = vmatpush1.msra.mxu0 0.0
    %1284 = vmatprep.subr.mxu0 0.0
    %1285 = vmatpush1.msra.mxu0 0.0
    %1286 = vmatprep.subr.mxu0 0.0
    %1287 = vmatpush1.msra.mxu0 0.0
    %1288 = vmatprep.subr.mxu0 0.0
    %1289 = vmatpush1.msra.mxu0 0.0
    %1290 = vmatprep.subr.mxu0 0.0
    %1291 = vmatpush1.msra.mxu0 0.0
    %1292 = vmatprep.subr.mxu0 0.0
    %1293 = vmatpush1.msra.mxu0 0.0
    %1294 = vmatprep.subr.mxu0 0.0
    %1295 = vmatpush1.msra.mxu0 0.0
    %1296 = vmatprep.mubr.f32.mxu0 0.0
    %1297 = vmatmul.mubr.f32.gmra.mrb[0].mxu0 %v627
    %v1298 = vpop.f32.mrb[0].mxu0
    %v1299 = vadd.f32 0.0, %v1298
    %v1300 = vpop.f32.mrb[0].mxu0
    %v1301 = vadd.f32 0.0, %v1300
    %1302 = vdwg.mxu0
    %1303 = vmatprep.subr.mxu0 %v1203
    %1304 = vmatpush1.msra.mxu0 %v1202
    %1305 = vmatprep.subr.mxu0 %v1211
    %1306 = vmatpush1.msra.mxu0 %v1210
    %1307 = vmatprep.subr.mxu0 %v1219
    %1308 = vmatpush1.msra.mxu0 %v1218
    %1309 = vmatprep.subr.mxu0 %v1227
    %1310 = vmatpush1.msra.mxu0 %v1226
    %1311 = vmatprep.subr.mxu0 0.0
    %1312 = vmatpush1.msra.mxu0 0.0
    %1313 = vmatprep.subr.mxu0 0.0
    %1314 = vmatpush1.msra.mxu0 0.0
    %1315 = vmatprep.subr.mxu0 0.0
    %1316 = vmatpush1.msra.mxu0 0.0
    %1317 = vmatprep.subr.mxu0 0.0
    %1318 = vmatpush1.msra.mxu0 0.0
    %1319 = vmatprep.subr.mxu0 0.0
    %1320 = vmatpush1.msra.mxu0 0.0
    %1321 = vmatprep.subr.mxu0 0.0
    %1322 = vmatpush1.msra.mxu0 0.0
    %1323 = vmatprep.subr.mxu0 0.0
    %1324 = vmatpush1.msra.mxu0 0.0
    %1325 = vmatprep.subr.mxu0 0.0
    %1326 = vmatpush1.msra.mxu0 0.0
    %1327 = vmatprep.subr.mxu0 0.0
    %1328 = vmatpush1.msra.mxu0 0.0
    %1329 = vmatprep.subr.mxu0 0.0
    %1330 = vmatpush1.msra.mxu0 0.0
    %1331 = vmatprep.subr.mxu0 0.0
    %1332 = vmatpush1.msra.mxu0 0.0
    %1333 = vmatprep.subr.mxu0 0.0
    %1334 = vmatpush1.msra.mxu0 0.0
    %1335 = vmatprep.subr.mxu0 0.0
    %1336 = vmatpush1.msra.mxu0 0.0
    %1337 = vmatprep.subr.mxu0 0.0
    %1338 = vmatpush1.msra.mxu0 0.0
    %1339 = vmatprep.subr.mxu0 0.0
    %1340 = vmatpush1.msra.mxu0 0.0
    %1341 = vmatprep.subr.mxu0 0.0
    %1342 = vmatpush1.msra.mxu0 0.0
    %1343 = vmatprep.subr.mxu0 0.0
    %1344 = vmatpush1.msra.mxu0 0.0
    %1345 = vmatprep.subr.mxu0 0.0
    %1346 = vmatpush1.msra.mxu0 0.0
    %1347 = vmatprep.subr.mxu0 0.0
    %1348 = vmatpush1.msra.mxu0 0.0
    %1349 = vmatprep.subr.mxu0 0.0
    %1350 = vmatpush1.msra.mxu0 0.0
    %1351 = vmatprep.subr.mxu0 0.0
    %1352 = vmatpush1.msra.mxu0 0.0
    %1353 = vmatprep.subr.mxu0 0.0
    %1354 = vmatpush1.msra.mxu0 0.0
    %1355 = vmatprep.subr.mxu0 0.0
    %1356 = vmatpush1.msra.mxu0 0.0
    %1357 = vmatprep.subr.mxu0 0.0
    %1358 = vmatpush1.msra.mxu0 0.0
    %1359 = vmatprep.subr.mxu0 0.0
    %1360 = vmatpush1.msra.mxu0 0.0
    %1361 = vmatprep.subr.mxu0 0.0
    %1362 = vmatpush1.msra.mxu0 0.0
    %1363 = vmatprep.subr.mxu0 0.0
    %1364 = vmatpush1.msra.mxu0 0.0
    %1365 = vmatprep.subr.mxu0 0.0
    %1366 = vmatpush1.msra.mxu0 0.0
    %1367 = vmatprep.mubr.f32.mxu0 0.0
    %1368 = vmatmul.mubr.f32.gmra.mrb[0].mxu0 %v627
    %v1369 = vpop.f32.mrb[0].mxu0
    %v1370 = vadd.f32 0.0, %v1369
    %v1371 = vpop.f32.mrb[0].mxu0
    %v1372 = vadd.f32 0.0, %v1371
    %1373 = vdwg.mxu0
    %1374 = vmatprep.subr.mxu0 %v1205
    %1375 = vmatpush1.msra.mxu0 %v1204
    %1376 = vmatprep.subr.mxu0 %v1213
    %1377 = vmatpush1.msra.mxu0 %v1212
    %1378 = vmatprep.subr.mxu0 %v1221
    %1379 = vmatpush1.msra.mxu0 %v1220
    %1380 = vmatprep.subr.mxu0 %v1229
    %1381 = vmatpush1.msra.mxu0 %v1228
    %1382 = vmatprep.subr.mxu0 0.0
    %1383 = vmatpush1.msra.mxu0 0.0
    %1384 = vmatprep.subr.mxu0 0.0
    %1385 = vmatpush1.msra.mxu0 0.0
    %1386 = vmatprep.subr.mxu0 0.0
    %1387 = vmatpush1.msra.mxu0 0.0
    %1388 = vmatprep.subr.mxu0 0.0
    %1389 = vmatpush1.msra.mxu0 0.0
    %1390 = vmatprep.subr.mxu0 0.0
    %1391 = vmatpush1.msra.mxu0 0.0
    %1392 = vmatprep.subr.mxu0 0.0
    %1393 = vmatpush1.msra.mxu0 0.0
    %1394 = vmatprep.subr.mxu0 0.0
    %1395 = vmatpush1.msra.mxu0 0.0
    %1396 = vmatprep.subr.mxu0 0.0
    %1397 = vmatpush1.msra.mxu0 0.0
    %1398 = vmatprep.subr.mxu0 0.0
    %1399 = vmatpush1.msra.mxu0 0.0
    %1400 = vmatprep.subr.mxu0 0.0
    %1401 = vmatpush1.msra.mxu0 0.0
    %1402 = vmatprep.subr.mxu0 0.0
    %1403 = vmatpush1.msra.mxu0 0.0
    %1404 = vmatprep.subr.mxu0 0.0
    %1405 = vmatpush1.msra.mxu0 0.0
    %1406 = vmatprep.subr.mxu0 0.0
    %1407 = vmatpush1.msra.mxu0 0.0
    %1408 = vmatprep.subr.mxu0 0.0
    %1409 = vmatpush1.msra.mxu0 0.0
    %1410 = vmatprep.subr.mxu0 0.0
    %1411 = vmatpush1.msra.mxu0 0.0
    %1412 = vmatprep.subr.mxu0 0.0
    %1413 = vmatpush1.msra.mxu0 0.0
    %1414 = vmatprep.subr.mxu0 0.0
    %1415 = vmatpush1.msra.mxu0 0.0
    %1416 = vmatprep.subr.mxu0 0.0
    %1417 = vmatpush1.msra.mxu0 0.0
    %1418 = vmatprep.subr.mxu0 0.0
    %1419 = vmatpush1.msra.mxu0 0.0
    %1420 = vmatprep.subr.mxu0 0.0
    %1421 = vmatpush1.msra.mxu0 0.0
    %1422 = vmatprep.subr.mxu0 0.0
    %1423 = vmatpush1.msra.mxu0 0.0
    %1424 = vmatprep.subr.mxu0 0.0
    %1425 = vmatpush1.msra.mxu0 0.0
    %1426 = vmatprep.subr.mxu0 0.0
    %1427 = vmatpush1.msra.mxu0 0.0
    %1428 = vmatprep.subr.mxu0 0.0
    %1429 = vmatpush1.msra.mxu0 0.0
    %1430 = vmatprep.subr.mxu0 0.0
    %1431 = vmatpush1.msra.mxu0 0.0
    %1432 = vmatprep.subr.mxu0 0.0
    %1433 = vmatpush1.msra.mxu0 0.0
    %1434 = vmatprep.subr.mxu0 0.0
    %1435 = vmatpush1.msra.mxu0 0.0
    %1436 = vmatprep.subr.mxu0 0.0
    %1437 = vmatpush1.msra.mxu0 0.0
    %1438 = vmatprep.mubr.f32.mxu0 0.0
    %1439 = vmatmul.mubr.f32.gmra.mrb[0].mxu0 %v627
    %v1440 = vpop.f32.mrb[0].mxu0
    %v1441 = vadd.f32 0.0, %v1440
    %v1442 = vpop.f32.mrb[0].mxu0
    %v1443 = vadd.f32 0.0, %v1442
    %1444 = vdwg.mxu0
    %1445 = vmatprep.subr.mxu0 %v1207
    %1446 = vmatpush1.msra.mxu0 %v1206
    %1447 = vmatprep.subr.mxu0 %v1215
    %1448 = vmatpush1.msra.mxu0 %v1214
    %1449 = vmatprep.subr.mxu0 %v1223
    %1450 = vmatpush1.msra.mxu0 %v1222
    %1451 = vmatprep.subr.mxu0 %v1231
    %1452 = vmatpush1.msra.mxu0 %v1230
    %1453 = vmatprep.subr.mxu0 0.0
    %1454 = vmatpush1.msra.mxu0 0.0
    %1455 = vmatprep.subr.mxu0 0.0
    %1456 = vmatpush1.msra.mxu0 0.0
    %1457 = vmatprep.subr.mxu0 0.0
    %1458 = vmatpush1.msra.mxu0 0.0
    %1459 = vmatprep.subr.mxu0 0.0
    %1460 = vmatpush1.msra.mxu0 0.0
    %1461 = vmatprep.subr.mxu0 0.0
    %1462 = vmatpush1.msra.mxu0 0.0
    %1463 = vmatprep.subr.mxu0 0.0
    %1464 = vmatpush1.msra.mxu0 0.0
    %1465 = vmatprep.subr.mxu0 0.0
    %1466 = vmatpush1.msra.mxu0 0.0
    %1467 = vmatprep.subr.mxu0 0.0
    %1468 = vmatpush1.msra.mxu0 0.0
    %1469 = vmatprep.subr.mxu0 0.0
    %1470 = vmatpush1.msra.mxu0 0.0
    %1471 = vmatprep.subr.mxu0 0.0
    %1472 = vmatpush1.msra.mxu0 0.0
    %1473 = vmatprep.subr.mxu0 0.0
    %1474 = vmatpush1.msra.mxu0 0.0
    %1475 = vmatprep.subr.mxu0 0.0
    %1476 = vmatpush1.msra.mxu0 0.0
    %1477 = vmatprep.subr.mxu0 0.0
    %1478 = vmatpush1.msra.mxu0 0.0
    %1479 = vmatprep.subr.mxu0 0.0
    %1480 = vmatpush1.msra.mxu0 0.0
    %1481 = vmatprep.subr.mxu0 0.0
    %1482 = vmatpush1.msra.mxu0 0.0
    %1483 = vmatprep.subr.mxu0 0.0
    %1484 = vmatpush1.msra.mxu0 0.0
    %1485 = vmatprep.subr.mxu0 0.0
    %1486 = vmatpush1.msra.mxu0 0.0
    %1487 = vmatprep.subr.mxu0 0.0
    %1488 = vmatpush1.msra.mxu0 0.0
    %1489 = vmatprep.subr.mxu0 0.0
    %1490 = vmatpush1.msra.mxu0 0.0
    %1491 = vmatprep.subr.mxu0 0.0
    %1492 = vmatpush1.msra.mxu0 0.0
    %1493 = vmatprep.subr.mxu0 0.0
    %1494 = vmatpush1.msra.mxu0 0.0
    %1495 = vmatprep.subr.mxu0 0.0
    %1496 = vmatpush1.msra.mxu0 0.0
    %1497 = vmatprep.subr.mxu0 0.0
    %1498 = vmatpush1.msra.mxu0 0.0
    %1499 = vmatprep.subr.mxu0 0.0
    %1500 = vmatpush1.msra.mxu0 0.0
    %1501 = vmatprep.subr.mxu0 0.0
    %1502 = vmatpush1.msra.mxu0 0.0
    %1503 = vmatprep.subr.mxu0 0.0
    %1504 = vmatpush1.msra.mxu0 0.0
    %1505 = vmatprep.subr.mxu0 0.0
    %1506 = vmatpush1.msra.mxu0 0.0
    %1507 = vmatprep.subr.mxu0 0.0
    %1508 = vmatpush1.msra.mxu0 0.0
    %1509 = vmatprep.mubr.f32.mxu0 0.0
    %1510 = vmatmul.mubr.f32.gmra.mrb[0].mxu0 %v627
    %v1511 = vpop.f32.mrb[0].mxu0
    %v1512 = vadd.f32 0.0, %v1511
    %v1513 = vpop.f32.mrb[0].mxu0
    %v1514 = vadd.f32 0.0, %v1513
    %1515 = vdwg.mxu0
    %v1516 = vmul.f32 %v1299, 2.0
    %v1517 = vmul.f32 %v1301, 2.0
    %v1518 = vmul.f32 %v1370, 2.0
    %v1519 = vmul.f32 %v1372, 2.0
    %v1520 = vmul.f32 %v1441, 2.0
    %v1521 = vmul.f32 %v1443, 2.0
    %v1522 = vmul.f32 %v1512, 2.0
    %v1523 = vmul.f32 %v1514, 2.0
    %v1524 = vsub.f32 %v983, %v1516
    %v1525 = vsub.f32 %v985, %v1517
    %v1526 = vsub.f32 %v1054, %v1518
    %v1527 = vsub.f32 %v1056, %v1519
    %v1528 = vsub.f32 %v1125, %v1520
    %v1529 = vsub.f32 %v1127, %v1521
    %v1530 = vsub.f32 %v1196, %v1522
    %v1531 = vsub.f32 %v1198, %v1523
    %v1532 = vrcp.pop %v696
    %v1533 = vrcp.pop %v698
    %v1534 = vrcp.pop %v767
    %v1535 = vrcp.pop %v769
    %v1536 = vrcp.pop %v838
    %v1537 = vrcp.pop %v840
    %v1538 = vrcp.pop %v909
    %v1539 = vrcp.pop %v911
    %v1540 = vmul.f32 %v696, %v1532
    %v1541 = vmul.f32 %v698, %v1533
    %v1542 = vmul.f32 %v767, %v1534
    %v1543 = vmul.f32 %v769, %v1535
    %v1544 = vmul.f32 %v838, %v1536
    %v1545 = vmul.f32 %v840, %v1537
    %v1546 = vmul.f32 %v909, %v1538
    %v1547 = vmul.f32 %v911, %v1539
    %v1548 = vsub.f32 2.0, %v1540
    %v1549 = vsub.f32 2.0, %v1541
    %v1550 = vsub.f32 2.0, %v1542
    %v1551 = vsub.f32 2.0, %v1543
    %v1552 = vsub.f32 2.0, %v1544
    %v1553 = vsub.f32 2.0, %v1545
    %v1554 = vsub.f32 2.0, %v1546
    %v1555 = vsub.f32 2.0, %v1547
    %v1556 = vmul.f32 %v1532, %v1548
    %v1557 = vmul.f32 %v1533, %v1549
    %v1558 = vmul.f32 %v1534, %v1550
    %v1559 = vmul.f32 %v1535, %v1551
    %v1560 = vmul.f32 %v1536, %v1552
    %v1561 = vmul.f32 %v1537, %v1553
    %v1562 = vmul.f32 %v1538, %v1554
    %v1563 = vmul.f32 %v1539, %v1555
    %v1564 = vsub.f32 %v521, 0.5
    %v1565 = vsub.f32 %v522, 0.5
    %v1566 = vsub.f32 %v523, 0.5
    %v1567 = vsub.f32 %v524, 0.5
    %v1568 = vsub.f32 %v525, 0.5
    %v1569 = vsub.f32 %v526, 0.5
    %v1570 = vsub.f32 %v527, 0.5
    %v1571 = vsub.f32 %v528, 0.5
    %v1572 = vmul.f32 %v1524, 0.5
    %v1573 = vmul.f32 %v1525, 0.5
    %v1574 = vmul.f32 %v1526, 0.5
    %v1575 = vmul.f32 %v1527, 0.5
    %v1576 = vmul.f32 %v1528, 0.5
    %v1577 = vmul.f32 %v1529, 0.5
    %v1578 = vmul.f32 %v1530, 0.5
    %v1579 = vmul.f32 %v1531, 0.5
    %v1580 = vmul.f32 %v1572, %v1556
    %v1581 = vmul.f32 %v1573, %v1557
    %v1582 = vmul.f32 %v1574, %v1558
    %v1583 = vmul.f32 %v1575, %v1559
    %v1584 = vmul.f32 %v1576, %v1560
    %v1585 = vmul.f32 %v1577, %v1561
    %v1586 = vmul.f32 %v1578, %v1562
    %v1587 = vmul.f32 %v1579, %v1563
    %v1588 = vsub.f32 %v1564, %v1580
    %v1589 = vsub.f32 %v1565, %v1581
    %v1590 = vsub.f32 %v1566, %v1582
    %v1591 = vsub.f32 %v1567, %v1583
    %v1592 = vsub.f32 %v1568, %v1584
    %v1593 = vsub.f32 %v1569, %v1585
    %v1594 = vsub.f32 %v1570, %v1586
    %v1595 = vsub.f32 %v1571, %v1587
    %s1596 = sadd.s32 0, 0
    %s1597 = smul.u32 %s1596, 1024
    %s1598 = sadd.s32 %s1597, 1024
    %p1599 = scmp.le.s32.totalorder %s1598, 1000
    // Predicated region
    $region18: #{tpu_custom_call.1} parent=1 // pred_check
      %p1600 = pneg %p1599
    $region19: #{tpu_custom_call.1} parent=1 // pred_check_branch
      %1602 = sbr.rel (%p1600) target = $region21
    $region20: #{tpu_custom_call.1} parent=1 // pred_region
      %v1603 = vld [vmem:[#allocation2] sm:$0xff]
      %v1612 = vcombine.low %v1588, %v1589
      %v1613 = vcombine.low %v1590, %v1591
      %v1614 = vcombine.low %v1592, %v1593
      %v1615 = vcombine.low %v1594, %v1595
      %v1617 = vunpack.c.l.s4 1966171168
      %v1618 = vunpack.c.0.s8 %v1617
      %v1619 = vlaneseq
      %v1620 = vshrl.u32 %v1619, 7
      %v1621 = vsub.s32 %v1618, %v1620
      %v1622 = vrot.slane %v1612, %v1621
      %v1624 = vunpack.c.l.s4 1966171168
      %v1625 = vunpack.c.0.s8 %v1624
      %v1626 = vlaneseq
      %v1627 = vshrl.u32 %v1626, 7
      %v1628 = vsub.s32 %v1625, %v1627
      %v1629 = vrot.slane %v1613, %v1628
      %v1631 = vunpack.c.l.s4 1966171168
      %v1632 = vunpack.c.0.s8 %v1631
      %v1633 = vlaneseq
      %v1634 = vshrl.u32 %v1633, 7
      %v1635 = vsub.s32 %v1632, %v1634
      %v1636 = vrot.slane %v1614, %v1635
      %v1638 = vunpack.c.l.s4 1966171168
      %v1639 = vunpack.c.0.s8 %v1638
      %v1640 = vlaneseq
      %v1641 = vshrl.u32 %v1640, 7
      %v1642 = vsub.s32 %v1639, %v1641
      %v1643 = vrot.slane %v1615, %v1642
      %v1644 = vcombine.low %v1622, %v1629
      %v1645 = vcombine.low %v1636, %v1643
      %v1647 = vunpack.c.l.s4 1966171168
      %v1648 = vunpack.c.0.s8 %v1647
      %v1649 = vlaneseq
      %v1650 = vshrl.u32 %v1649, 7
      %v1651 = vsub.s32 %v1648, %v1650
      %v1652 = vrot.slane %v1644, %v1651
      %v1654 = vunpack.c.l.s4 1966171168
      %v1655 = vunpack.c.0.s8 %v1654
      %v1656 = vlaneseq
      %v1657 = vshrl.u32 %v1656, 7
      %v1658 = vsub.s32 %v1655, %v1657
      %v1659 = vrot.slane %v1645, %v1658
      %v1660 = vcombine.low %v1652, %v1659
      %v1662 = vadd.f32 %v1603, %v1660
      %1663 = vst [vmem:[#allocation2] sm:$0xff] %v1662
      %v1664 = vld [vmem:[#allocation3] sm:$0xff]
      %v1665 = vmul.f32 %v1588, %v1588
      %v1666 = vmul.f32 %v1589, %v1589
      %v1667 = vmul.f32 %v1590, %v1590
      %v1668 = vmul.f32 %v1591, %v1591
      %v1669 = vmul.f32 %v1592, %v1592
      %v1670 = vmul.f32 %v1593, %v1593
      %v1671 = vmul.f32 %v1594, %v1594
      %v1672 = vmul.f32 %v1595, %v1595
      %v1681 = vcombine.low %v1665, %v1666
      %v1682 = vcombine.low %v1667, %v1668
      %v1683 = vcombine.low %v1669, %v1670
      %v1684 = vcombine.low %v1671, %v1672
      %v1686 = vunpack.c.l.s4 1966171168
      %v1687 = vunpack.c.0.s8 %v1686
      %v1688 = vlaneseq
      %v1689 = vshrl.u32 %v1688, 7
      %v1690 = vsub.s32 %v1687, %v1689
      %v1691 = vrot.slane %v1681, %v1690
      %v1693 = vunpack.c.l.s4 1966171168
      %v1694 = vunpack.c.0.s8 %v1693
      %v1695 = vlaneseq
      %v1696 = vshrl.u32 %v1695, 7
      %v1697 = vsub.s32 %v1694, %v1696
      %v1698 = vrot.slane %v1682, %v1697
      %v1700 = vunpack.c.l.s4 1966171168
      %v1701 = vunpack.c.0.s8 %v1700
      %v1702 = vlaneseq
      %v1703 = vshrl.u32 %v1702, 7
      %v1704 = vsub.s32 %v1701, %v1703
      %v1705 = vrot.slane %v1683, %v1704
      %v1707 = vunpack.c.l.s4 1966171168
      %v1708 = vunpack.c.0.s8 %v1707
      %v1709 = vlaneseq
      %v1710 = vshrl.u32 %v1709, 7
      %v1711 = vsub.s32 %v1708, %v1710
      %v1712 = vrot.slane %v1684, %v1711
      %v1713 = vcombine.low %v1691, %v1698
      %v1714 = vcombine.low %v1705, %v1712
      %v1716 = vunpack.c.l.s4 1966171168
      %v1717 = vunpack.c.0.s8 %v1716
      %v1718 = vlaneseq
      %v1719 = vshrl.u32 %v1718, 7
      %v1720 = vsub.s32 %v1717, %v1719
      %v1721 = vrot.slane %v1713, %v1720
      %v1723 = vunpack.c.l.s4 1966171168
      %v1724 = vunpack.c.0.s8 %v1723
      %v1725 = vlaneseq
      %v1726 = vshrl.u32 %v1725, 7
      %v1727 = vsub.s32 %v1724, %v1726
      %v1728 = vrot.slane %v1714, %v1727
      %v1729 = vcombine.low %v1721, %v1728
      %v1731 = vadd.f32 %v1664, %v1729
      %1732 = vst [vmem:[#allocation3] sm:$0xff] %v1731
    $region21: #{tpu_custom_call.1} parent=1 // pred_fallthru
      _
    %p1733 = scmp.gt.s32.totalorder %s1598, 1000
    // Predicated region
    $region22: #{tpu_custom_call.1} parent=1 // pred_check
      %p1734 = pneg %p1733
    $region23: #{tpu_custom_call.1} parent=1 // pred_check_branch
      %1736 = sbr.rel (%p1734) target = $region25
    $region24: #{tpu_custom_call.1} parent=1 // pred_region
      %v1737 = vlaneseq
      %v1738 = vand.u32 %v1737, 127
      %v1739 = vadd.s32 %v1738, 128
      %v1740 = vadd.s32 %v1738, 256
      %v1741 = vadd.s32 %v1738, 384
      %v1742 = vadd.s32 %v1738, 512
      %v1743 = vadd.s32 %v1738, 640
      %v1744 = vadd.s32 %v1738, 768
      %v1745 = vadd.s32 %v1738, 896
      %v1746 = vstv %s1597
      %v1747 = vadd.s32 %v1746, %v1738
      %v1748 = vadd.s32 %v1746, %v1739
      %v1749 = vadd.s32 %v1746, %v1740
      %v1750 = vadd.s32 %v1746, %v1741
      %v1751 = vadd.s32 %v1746, %v1742
      %v1752 = vadd.s32 %v1746, %v1743
      %v1753 = vadd.s32 %v1746, %v1744
      %v1754 = vadd.s32 %v1746, %v1745
      %vm1755 = vcmp.lt.s32.totalorder %v1747, 1000
      %vm1756 = vcmp.lt.s32.totalorder %v1748, 1000
      %vm1757 = vcmp.lt.s32.totalorder %v1749, 1000
      %vm1758 = vcmp.lt.s32.totalorder %v1750, 1000
      %vm1759 = vcmp.lt.s32.totalorder %v1751, 1000
      %vm1760 = vcmp.lt.s32.totalorder %v1752, 1000
      %vm1761 = vcmp.lt.s32.totalorder %v1753, 1000
      %vm1762 = vcmp.lt.s32.totalorder %v1754, 1000
      %v1763 = vsel %vm1755, %v1588, 0.0
      %v1764 = vsel %vm1756, %v1589, 0.0
      %v1765 = vsel %vm1757, %v1590, 0.0
      %v1766 = vsel %vm1758, %v1591, 0.0
      %v1767 = vsel %vm1759, %v1592, 0.0
      %v1768 = vsel %vm1760, %v1593, 0.0
      %v1769 = vsel %vm1761, %v1594, 0.0
      %v1770 = vsel %vm1762, %v1595, 0.0
      %v1771 = vld [vmem:[#allocation2] sm:$0xff]
      %v1780 = vcombine.low %v1763, %v1764
      %v1781 = vcombine.low %v1765, %v1766
      %v1782 = vcombine.low %v1767, %v1768
      %v1783 = vcombine.low %v1769, %v1770
      %v1785 = vunpack.c.l.s4 1966171168
      %v1786 = vunpack.c.0.s8 %v1785
      %v1787 = vlaneseq
      %v1788 = vshrl.u32 %v1787, 7
      %v1789 = vsub.s32 %v1786, %v1788
      %v1790 = vrot.slane %v1780, %v1789
      %v1792 = vunpack.c.l.s4 1966171168
      %v1793 = vunpack.c.0.s8 %v1792
      %v1794 = vlaneseq
      %v1795 = vshrl.u32 %v1794, 7
      %v1796 = vsub.s32 %v1793, %v1795
      %v1797 = vrot.slane %v1781, %v1796
      %v1799 = vunpack.c.l.s4 1966171168
      %v1800 = vunpack.c.0.s8 %v1799
      %v1801 = vlaneseq
      %v1802 = vshrl.u32 %v1801, 7
      %v1803 = vsub.s32 %v1800, %v1802
      %v1804 = vrot.slane %v1782, %v1803
      %v1806 = vunpack.c.l.s4 1966171168
      %v1807 = vunpack.c.0.s8 %v1806
      %v1808 = vlaneseq
      %v1809 = vshrl.u32 %v1808, 7
      %v1810 = vsub.s32 %v1807, %v1809
      %v1811 = vrot.slane %v1783, %v1810
      %v1812 = vcombine.low %v1790, %v1797
      %v1813 = vcombine.low %v1804, %v1811
      %v1815 = vunpack.c.l.s4 1966171168
      %v1816 = vunpack.c.0.s8 %v1815
      %v1817 = vlaneseq
      %v1818 = vshrl.u32 %v1817, 7
      %v1819 = vsub.s32 %v1816, %v1818
      %v1820 = vrot.slane %v1812, %v1819
      %v1822 = vunpack.c.l.s4 1966171168
      %v1823 = vunpack.c.0.s8 %v1822
      %v1824 = vlaneseq
      %v1825 = vshrl.u32 %v1824, 7
      %v1826 = vsub.s32 %v1823, %v1825
      %v1827 = vrot.slane %v1813, %v1826
      %v1828 = vcombine.low %v1820, %v1827
      %v1830 = vadd.f32 %v1771, %v1828
      %1831 = vst [vmem:[#allocation2] sm:$0xff] %v1830
      %v1832 = vld [vmem:[#allocation3] sm:$0xff]
      %v1833 = vmul.f32 %v1763, %v1763
      %v1834 = vmul.f32 %v1764, %v1764
      %v1835 = vmul.f32 %v1765, %v1765
      %v1836 = vmul.f32 %v1766, %v1766
      %v1837 = vmul.f32 %v1767, %v1767
      %v1838 = vmul.f32 %v1768, %v1768
      %v1839 = vmul.f32 %v1769, %v1769
      %v1840 = vmul.f32 %v1770, %v1770
      %v1849 = vcombine.low %v1833, %v1834
      %v1850 = vcombine.low %v1835, %v1836
      %v1851 = vcombine.low %v1837, %v1838
      %v1852 = vcombine.low %v1839, %v1840
      %v1854 = vunpack.c.l.s4 1966171168
      %v1855 = vunpack.c.0.s8 %v1854
      %v1856 = vlaneseq
      %v1857 = vshrl.u32 %v1856, 7
      %v1858 = vsub.s32 %v1855, %v1857
      %v1859 = vrot.slane %v1849, %v1858
      %v1861 = vunpack.c.l.s4 1966171168
      %v1862 = vunpack.c.0.s8 %v1861
      %v1863 = vlaneseq
      %v1864 = vshrl.u32 %v1863, 7
      %v1865 = vsub.s32 %v1862, %v1864
      %v1866 = vrot.slane %v1850, %v1865
      %v1868 = vunpack.c.l.s4 1966171168
      %v1869 = vunpack.c.0.s8 %v1868
      %v1870 = vlaneseq
      %v1871 = vshrl.u32 %v1870, 7
      %v1872 = vsub.s32 %v1869, %v1871
      %v1873 = vrot.slane %v1851, %v1872
      %v1875 = vunpack.c.l.s4 1966171168
      %v1876 = vunpack.c.0.s8 %v1875
      %v1877 = vlaneseq
      %v1878 = vshrl.u32 %v1877, 7
      %v1879 = vsub.s32 %v1876, %v1878
      %v1880 = vrot.slane %v1852, %v1879
      %v1881 = vcombine.low %v1859, %v1866
      %v1882 = vcombine.low %v1873, %v1880
      %v1884 = vunpack.c.l.s4 1966171168
      %v1885 = vunpack.c.0.s8 %v1884
      %v1886 = vlaneseq
      %v1887 = vshrl.u32 %v1886, 7
      %v1888 = vsub.s32 %v1885, %v1887
      %v1889 = vrot.slane %v1881, %v1888
      %v1891 = vunpack.c.l.s4 1966171168
      %v1892 = vunpack.c.0.s8 %v1891
      %v1893 = vlaneseq
      %v1894 = vshrl.u32 %v1893, 7
      %v1895 = vsub.s32 %v1892, %v1894
      %v1896 = vrot.slane %v1882, %v1895
      %v1897 = vcombine.low %v1889, %v1896
      %v1899 = vadd.f32 %v1832, %v1897
      %1900 = vst [vmem:[#allocation3] sm:$0xff] %v1899
    $region25: #{tpu_custom_call.1} parent=1 // pred_fallthru
      _
    // Predicated region
    $region26: #{tpu_custom_call.1} parent=1 // pred_check
      %p1901 = pneg %p40
    $region27: #{tpu_custom_call.1} parent=1 // pred_check_branch
      %1903 = sbr.rel (%p1901) target = $region29
    $region28: #{tpu_custom_call.1} parent=1 // pred_region
      %v1904 = vld [vmem:[#allocation2] sm:$0xff]
      %v1906 = vlaneseq
      %v1907 = vshrl.u32 %v1906, 7
      %v1908 = vsub.s32 0, %v1907
      %v1909 = vrot.slane %v1904, %v1908
      %v1910 = vlaneseq
      %v1911 = vshrl.u32 %v1910, 7
      %v1912 = vsub.s32 1, %v1911
      %v1913 = vrot.slane %v1904, %v1912
      %v1914 = vlaneseq
      %v1915 = vshrl.u32 %v1914, 7
      %v1916 = vsub.s32 2, %v1915
      %v1917 = vrot.slane %v1904, %v1916
      %v1918 = vlaneseq
      %v1919 = vshrl.u32 %v1918, 7
      %v1920 = vsub.s32 3, %v1919
      %v1921 = vrot.slane %v1904, %v1920
      %v1922 = vlaneseq
      %v1923 = vshrl.u32 %v1922, 7
      %v1924 = vsub.s32 4, %v1923
      %v1925 = vrot.slane %v1904, %v1924
      %v1926 = vlaneseq
      %v1927 = vshrl.u32 %v1926, 7
      %v1928 = vsub.s32 5, %v1927
      %v1929 = vrot.slane %v1904, %v1928
      %v1930 = vlaneseq
      %v1931 = vshrl.u32 %v1930, 7
      %v1932 = vsub.s32 6, %v1931
      %v1933 = vrot.slane %v1904, %v1932
      %v1934 = vlaneseq
      %v1935 = vshrl.u32 %v1934, 7
      %v1936 = vsub.s32 7, %v1935
      %v1937 = vrot.slane %v1904, %v1936
      %vm1946 = vcmask 1040384
      %v1947 = vsel %vm1946, %v1909, 0.0
      %v1948 = vsel %vm1946, %v1913, 0.0
      %v1949 = vadd.f32 %v1947, %v1948
      %v1950 = vsel %vm1946, %v1917, 0.0
      %v1951 = vadd.f32 %v1949, %v1950
      %v1952 = vsel %vm1946, %v1921, 0.0
      %v1953 = vadd.f32 %v1951, %v1952
      %v1954 = vsel %vm1946, %v1925, 0.0
      %v1955 = vadd.f32 %v1953, %v1954
      %v1956 = vsel %vm1946, %v1929, 0.0
      %v1957 = vadd.f32 %v1955, %v1956
      %v1958 = vsel %vm1946, %v1933, 0.0
      %v1959 = vadd.f32 %v1957, %v1958
      %v1960 = vsel %vm1946, %v1937, 0.0
      %v1961 = vadd.f32 %v1959, %v1960
      %1962 = vadd.xlane.f32.xlu0 %v1961
      %v1963 = vpop.xlane.xlu0 %1962
      %v1964 = vrot.slane %v1963, 4
      %v1965 = vadd.f32 %v1963, %v1964
      %v1966 = vrot.slane %v1965, 2
      %v1967 = vadd.f32 %v1965, %v1966
      %v1968 = vrot.slane %v1967, 1
      %v1969 = vadd.f32 %v1967, %v1968
      %s1970 = vtos %v1969
      %v1971 = vstv %s1970
      %vm1972 = vcmask 0
      %1973 = vst.msk [vmem:[#allocation4] sm:$0x1] %vm1972, %v1971
      %v1974 = vld [vmem:[#allocation3] sm:$0xff]
      %v1976 = vlaneseq
      %v1977 = vshrl.u32 %v1976, 7
      %v1978 = vsub.s32 0, %v1977
      %v1979 = vrot.slane %v1974, %v1978
      %v1980 = vlaneseq
      %v1981 = vshrl.u32 %v1980, 7
      %v1982 = vsub.s32 1, %v1981
      %v1983 = vrot.slane %v1974, %v1982
      %v1984 = vlaneseq
      %v1985 = vshrl.u32 %v1984, 7
      %v1986 = vsub.s32 2, %v1985
      %v1987 = vrot.slane %v1974, %v1986
      %v1988 = vlaneseq
      %v1989 = vshrl.u32 %v1988, 7
      %v1990 = vsub.s32 3, %v1989
      %v1991 = vrot.slane %v1974, %v1990
      %v1992 = vlaneseq
      %v1993 = vshrl.u32 %v1992, 7
      %v1994 = vsub.s32 4, %v1993
      %v1995 = vrot.slane %v1974, %v1994
      %v1996 = vlaneseq
      %v1997 = vshrl.u32 %v1996, 7
      %v1998 = vsub.s32 5, %v1997
      %v1999 = vrot.slane %v1974, %v1998
      %v2000 = vlaneseq
      %v2001 = vshrl.u32 %v2000, 7
      %v2002 = vsub.s32 6, %v2001
      %v2003 = vrot.slane %v1974, %v2002
      %v2004 = vlaneseq
      %v2005 = vshrl.u32 %v2004, 7
      %v2006 = vsub.s32 7, %v2005
      %v2007 = vrot.slane %v1974, %v2006
      %v2016 = vsel %vm1946, %v1979, 0.0
      %v2017 = vsel %vm1946, %v1983, 0.0
      %v2018 = vadd.f32 %v2016, %v2017
      %v2019 = vsel %vm1946, %v1987, 0.0
      %v2020 = vadd.f32 %v2018, %v2019
      %v2021 = vsel %vm1946, %v1991, 0.0
      %v2022 = vadd.f32 %v2020, %v2021
      %v2023 = vsel %vm1946, %v1995, 0.0
      %v2024 = vadd.f32 %v2022, %v2023
      %v2025 = vsel %vm1946, %v1999, 0.0
      %v2026 = vadd.f32 %v2024, %v2025
      %v2027 = vsel %vm1946, %v2003, 0.0
      %v2028 = vadd.f32 %v2026, %v2027
      %v2029 = vsel %vm1946, %v2007, 0.0
      %v2030 = vadd.f32 %v2028, %v2029
      %2031 = vadd.xlane.f32.xlu0 %v2030
      %v2032 = vpop.xlane.xlu0 %2031
      %v2033 = vrot.slane %v2032, 4
      %v2034 = vadd.f32 %v2032, %v2033
      %v2035 = vrot.slane %v2034, 2
      %v2036 = vadd.f32 %v2034, %v2035
      %v2037 = vrot.slane %v2036, 1
      %v2038 = vadd.f32 %v2036, %v2037
      %s2039 = vtos %v2038
      %v2040 = vstv %s2039
      %2041 = vst.msk [vmem:[#allocation6] sm:$0x1] %vm1972, %v2040
    $region29: #{tpu_custom_call.1} parent=1 // pred_fallthru
      _
    // Predicated region
    $region30: #{tpu_custom_call.1} parent=1 // pred_check
      _
    $region31: #{tpu_custom_call.1} parent=1 // pred_check_branch
      %2043 = sbr.rel (0) target = $region33
    $region32: #{tpu_custom_call.1} parent=1 // pred_region
      %s2045 = ssub.s32 16, 16
      %2046 = vsyncadd [#allocation5], %s2045
      %s2048 = sshll.u32 [#allocation4], 4
      %s2049 = int_to_ptr.vmem [resolvable:$true] %s2048
      %2051 = dma.vmem_to_hbm [thread:$0]  %s2049, 16, %s3, [#allocation5]
    $region33: #{tpu_custom_call.1} parent=1 // pred_fallthru
      _
    // Predicated region
    $region34: #{tpu_custom_call.1} parent=1 // pred_check
      _
    $region35: #{tpu_custom_call.1} parent=1 // pred_check_branch
      %2053 = sbr.rel (0) target = $region37
    $region36: #{tpu_custom_call.1} parent=1 // pred_region
      %s2055 = ssub.s32 16, 16
      %2056 = vsyncadd [#allocation7], %s2055
      %s2058 = sshll.u32 [#allocation6], 4
      %s2059 = int_to_ptr.vmem [resolvable:$true] %s2058
      %2061 = dma.vmem_to_hbm [thread:$0]  %s2059, 16, %s4, [#allocation7]
    $region37: #{tpu_custom_call.1} parent=1 // pred_fallthru
      _
    // Predicated region
    $region38: #{tpu_custom_call.1} parent=1 // pred_check
      _
    $region39: #{tpu_custom_call.1} parent=1 // pred_check_branch
      %2063 = sbr.rel (0) target = $region41
    $region40: #{tpu_custom_call.1} parent=1 // pred_region
      %2064 = dma.done [#allocation5], 16
    $region41: #{tpu_custom_call.1} parent=1 // pred_fallthru
      _
    // Predicated region
    $region42: #{tpu_custom_call.1} parent=1 // pred_check
      _
    $region43: #{tpu_custom_call.1} parent=1 // pred_check_branch
      %2066 = sbr.rel (0) target = $region45
    $region44: #{tpu_custom_call.1} parent=1 // pred_region
      %2067 = dma.done [#allocation7], 16
    $region45: #{tpu_custom_call.1} parent=1 // pred_fallthru
      _
    %2068 = vsyncpa [#allocation5], 1
    %2069 = vsyncpa [#allocation7], 1

</llo_original>
